<compile_context>
chip_gen: v5e
topology: v5e:2x2
jax: 0.10.0
libtpu: 0.0.40
codegen_flags: <defaults>
</compile_context>

<pallas_src>
import jax
import jax.numpy as jnp
from jax.experimental import pallas as pl
from jax.experimental.pallas import tpu as pltpu

# AdaptiveLIF constants (module defaults)
B0 = 0.2
BETA = 1.8
RM = 1.0
DT = 1.0

LANE = 128     # TPU lane width (last dim)
SUBLANE = 8    # TPU sublane width (second-to-last dim)


def _round_up(n, m):
    return ((n + m - 1) // m) * m


def make_rsnn_kernel(num_layers, t_chunk):
    """Kernel for `num_layers` recurrent blocks + fc_out + output AdaptiveLIF.

    Ref layout (inputs):
      xproj                                      [t_chunk, 8, H0p]  (f32, block)
      layer 0:      Whh, b_hh, alpha, kappa, rho, omr               (6 refs)
      layers 1..L:  Win, b_in, Whh, b_hh, alpha, kappa, rho, omr    (8 refs each)
      fc_out:       W, b, alpha, kappa, rho, omr                    (6 refs)
    Output: [t_chunk, 8, Cp] block.  Scratch: (u, eta, h_last) per layer + (u, eta) out.
    """

    def kernel(*refs):
        idx = 0
        xproj_ref = refs[idx]; idx += 1
        layer_refs = [refs[idx:idx + 6]]; idx += 6
        for _ in range(1, num_layers):
            layer_refs.append(refs[idx:idx + 8]); idx += 8
        fcW_ref, fcb_ref, ao_ref, ko_ref, ro_ref, oo_ref = refs[idx:idx + 6]; idx += 6
        out_ref = refs[idx]; idx += 1
        scr = refs[idx:]

        tc = pl.program_id(1)          # time-chunk index (serial recurrence axis)

        # all_reset(): u = 0, eta = b0, h_last = 0 at the start of each batch
        # block's time sweep.
        @pl.when(tc == 0)
        def _():
            for l in range(num_layers):
                scr[3 * l][...] = jnp.zeros_like(scr[3 * l])
                scr[3 * l + 1][...] = jnp.full_like(scr[3 * l + 1], B0)
                scr[3 * l + 2][...] = jnp.zeros_like(scr[3 * l + 2])
            scr[3 * num_layers][...] = jnp.zeros_like(scr[3 * num_layers])
            scr[3 * num_layers + 1][...] = jnp.full_like(scr[3 * num_layers + 1], B0)

        # ---- hoist all time-invariant loads out of the unrolled time loop ----
        W_in, B_in, W_hh, B_hh = [], [], [], []
        ALP, KAP, RHO, OMR = [], [], [], []
        for l in range(num_layers):
            if l == 0:
                whh, bhh, al, ka, rh, om = layer_refs[0]
                W_in.append(None); B_in.append(None)
            else:
                win, bin_, whh, bhh, al, ka, rh, om = layer_refs[l]
                W_in.append(win[...]); B_in.append(bin_[...])
            W_hh.append(whh[...]); B_hh.append(bhh[...])
            ALP.append(al[...]); KAP.append(ka[...])
            RHO.append(rh[...]); OMR.append(om[...])
        fw = fcW_ref[...]; fb = fcb_ref[...]
        ao = ao_ref[...]; ko = ko_ref[...]; ro = ro_ref[...]; oo = oo_ref[...]

        # ---- load persistent neuron state once per chunk ----
        U = [scr[3 * l][...] for l in range(num_layers)]
        ETA = [scr[3 * l + 1][...] for l in range(num_layers)]
        H = [scr[3 * l + 2][...] for l in range(num_layers)]      # bf16 spikes
        u_o = scr[3 * num_layers][...]
        eta_o = scr[3 * num_layers + 1][...]

        def lif(x_cur, u, eta, alpha, kappa, rho, omr):
            # neuron_charge (alpha/kappa precomputed in wrapper)
            u = u * alpha + kappa * x_cur
            # neuron_fire: surrogate forward = Heaviside step
            v_th = B0 + BETA * eta
            spikes = (u - v_th > 0.0).astype(jnp.float32)
            # update_neuronstat_after_fire (uses OLD eta for the reset term)
            u = u - spikes * (eta * BETA + B0)
            eta = rho * eta + omr * spikes
            return spikes, u, eta

        for lt in range(t_chunk):
            # PyTorch skips the whole sparse_hh branch at global t == 0.
            # h_last is zero then, so only the recurrent bias needs gating.
            gate = None if lt > 0 else jnp.where(tc > 0, 1.0, 0.0).astype(jnp.float32)

            h = None
            for l in range(num_layers):
                if l == 0:
                    x_ff = xproj_ref[lt]                    # precomputed x@Win + b_in
                else:
                    x_ff = jnp.dot(h, W_in[l],
                                   preferred_element_type=jnp.float32) + B_in[l]
                hh = jnp.dot(H[l], W_hh[l], preferred_element_type=jnp.float32)
                b_hh = B_hh[l] if gate is None else gate * B_hh[l]
                x_cur = x_ff + hh + b_hh
                spikes, U[l], ETA[l] = lif(x_cur, U[l], ETA[l],
                                           ALP[l], KAP[l], RHO[l], OMR[l])
                H[l] = spikes.astype(jnp.bfloat16)          # h_last (bf16 for MXU)
                h = H[l]

            # fc_out + output AdaptiveLIF
            o = jnp.dot(h, fw, preferred_element_type=jnp.float32) + fb
            out_spikes, u_o, eta_o = lif(o, u_o, eta_o, ao, ko, ro, oo)
            out_ref[lt] = out_spikes                        # lane-dense VMEM write

        # ---- commit state once per chunk ----
        for l in range(num_layers):
            scr[3 * l][...] = U[l]
            scr[3 * l + 1][...] = ETA[l]
            scr[3 * l + 2][...] = H[l]
        scr[3 * num_layers][...] = u_o
        scr[3 * num_layers + 1][...] = eta_o

    return kernel


# -------------------------- wrapper-side preprocessing --------------------------

def _prep_slinear(W, M, b, in_pad, out_pad, dtype=jnp.bfloat16):
    """Masked, transposed, zero-padded weight [in_pad, out_pad] + bias [1, out_pad]."""
    Wm = (W * M).T                                    # [in, out]
    Wp = jnp.zeros((in_pad, out_pad), jnp.float32).at[:Wm.shape[0], :Wm.shape[1]].set(Wm)
    bp = jnp.zeros((1, out_pad), jnp.float32).at[0, :b.shape[0]].set(b)
    return Wp.astype(dtype), bp


def _prep_lif(tau_m, tau_adp, out_pad):
    """Precompute alpha, (1-alpha)*Rm, rho, (1-rho); padded neurons get safe taus."""
    n = tau_m.shape[0]
    tm = jnp.full((out_pad,), 200.0, jnp.float32).at[:n].set(tau_m)
    ta = jnp.full((out_pad,), 20.0, jnp.float32).at[:n].set(tau_adp)
    alpha = jnp.exp(-DT / tm)
    rho = jnp.exp(-DT / ta)
    kappa = (1.0 - alpha) * RM
    omr = 1.0 - rho
    return alpha[None, :], kappa[None, :], rho[None, :], omr[None, :]


def rsnn_forward(x_btd, params, t_chunk=8):
    """x_btd: [B, T, D_in] (PyTorch convention). Returns [B, T, num_classes]."""
    B, T, D = x_btd.shape
    layer_params = params["layers"]
    W_fc, M_fc, b_fc, tau_m_o, tau_adp_o = params["fc"]
    num_layers = len(layer_params)
    C = W_fc.shape[0]

    t_chunk = max(1, min(t_chunk, T))
    T_pad = _round_up(T, t_chunk)
    B_pad = _round_up(B, SUBLANE)
    C_pad = _round_up(C, LANE)
    H = [lp[0].shape[0] for lp in layer_params]       # hidden sizes (W_in is [out, in])
    H_pad = [_round_up(h, LANE) for h in H]

    # Hoist the first block's feed-forward projection over ALL timesteps:
    # one batched [T_pad*B_pad, D] @ [D, H0_pad] matmul (plain XLA).
    W_in0, M_in0, b_in0 = layer_params[0][0], layer_params[0][1], layer_params[0][2]
    Wm0 = (W_in0 * M_in0).T                           # [D, H0]
    Wm0p = jnp.zeros((D, H_pad[0]), jnp.float32).at[:, :H[0]].set(Wm0)
    b0p = jnp.zeros((1, H_pad[0]), jnp.float32).at[0, :H[0]].set(b_in0)

    x_tbd = jnp.transpose(x_btd, (1, 0, 2))           # time-major
    x_tbd = jnp.pad(x_tbd, ((0, T_pad - T), (0, B_pad - B), (0, 0)))
    xproj = (x_tbd.reshape(T_pad * B_pad, D) @ Wm0p + b0p)
    xproj = xproj.reshape(T_pad, B_pad, H_pad[0])

    flat_inputs = [xproj]
    in_specs = [pl.BlockSpec((t_chunk, SUBLANE, H_pad[0]), lambda b, t: (t, b, 0))]

    def full_spec(arr):
        nd = arr.ndim
        return pl.BlockSpec(arr.shape, lambda b, t, _nd=nd: (0,) * _nd)

    def add(arr):
        flat_inputs.append(arr)
        in_specs.append(full_spec(arr))

    for l, lp in enumerate(layer_params):
        W_in, M_in, b_in, W_hh, M_hh, b_hh, tau_m, tau_adp = lp
        if l > 0:
            Wip, bip = _prep_slinear(W_in, M_in, b_in, H_pad[l - 1], H_pad[l])
            add(Wip); add(bip)
        Whp, bhp = _prep_slinear(W_hh, M_hh, b_hh, H_pad[l], H_pad[l])
        add(Whp); add(bhp)
        for a in _prep_lif(tau_m, tau_adp, H_pad[l]):
            add(a)

    Wfp, bfp = _prep_slinear(W_fc, M_fc, b_fc, H_pad[-1], C_pad)
    add(Wfp); add(bfp)
    for a in _prep_lif(tau_m_o, tau_adp_o, C_pad):
        add(a)

    scratch_shapes = []
    for hp in H_pad:
        scratch_shapes += [pltpu.VMEM((SUBLANE, hp), jnp.float32),    # u
                           pltpu.VMEM((SUBLANE, hp), jnp.float32),    # eta
                           pltpu.VMEM((SUBLANE, hp), jnp.bfloat16)]   # h_last (spikes)
    scratch_shapes += [pltpu.VMEM((SUBLANE, C_pad), jnp.float32),     # u_out
                       pltpu.VMEM((SUBLANE, C_pad), jnp.float32)]     # eta_out

    grid = (B_pad // SUBLANE, T_pad // t_chunk)

    out = pl.pallas_call(
        make_rsnn_kernel(num_layers, t_chunk),
        out_shape=jax.ShapeDtypeStruct((T_pad, B_pad, C_pad), jnp.float32),
        grid_spec=pltpu.PrefetchScalarGridSpec(
            num_scalar_prefetch=0,
            grid=grid,
            in_specs=in_specs,
            out_specs=pl.BlockSpec((t_chunk, SUBLANE, C_pad), lambda b, t: (t, b, 0)),
            scratch_shapes=scratch_shapes,
        ),
        compiler_params=pltpu.CompilerParams(
            # batch blocks may shard across TensorCores (v7x); time is serial.
            dimension_semantics=("parallel", "arbitrary"),
            vmem_limit_bytes=32 * 1024 * 1024,
        ),
    )(*flat_inputs)

    return jnp.transpose(out[:T, :B, :C], (1, 0, 2))


def init_params(key, layers, num_classes, sparsity=0.3):
    """Deterministic synthetic parameters with the shapes implied by __init__."""

    def make_slinear(k, out_f, in_f):
        k1, k2 = jax.random.split(k)
        limit = (6.0 / (in_f + out_f)) ** 0.5               # xavier_uniform
        W = jax.random.uniform(k1, (out_f, in_f), jnp.float32, -limit, limit)
        pcnt = jnp.percentile(jnp.abs(W), 100.0 * (1.0 - sparsity))
        M = (jnp.abs(W) >= pcnt).astype(jnp.float32)         # _mask_low_weight
        bound = 1.0 / (in_f ** 0.5)
        b = jax.random.uniform(k2, (out_f,), jnp.float32, -bound, bound)
        return W, M, b

    def make_lif(k, size):
        k1, k2 = jax.random.split(k)
        tau_m = 200.0 + 25.0 * jax.random.normal(k1, (size,), jnp.float32)
        tau_adp = 20.0 + 5.0 * jax.random.normal(k2, (size,), jnp.float32)
        return tau_m, tau_adp

    params = {"layers": [], "fc": None}
    for i in range(1, len(layers)):
        key, k1, k2, k3 = jax.random.split(key, 4)
        W_in, M_in, b_in = make_slinear(k1, layers[i], layers[i - 1])
        # NOTE: the PyTorch __init__ zeroes sparse_hh.weight; a nonzero synthetic
        # init is used here so the recurrent matmul path is actually exercised.
        W_hh, M_hh, b_hh = make_slinear(k2, layers[i], layers[i])
        tm, ta = make_lif(k3, layers[i])
        params["layers"].append((W_in, M_in, b_in, W_hh, M_hh, b_hh, tm, ta))
    key, k1, k2 = jax.random.split(key, 3)
    W_out, M_out, b_out = make_slinear(k1, num_classes, layers[-1])
    tm_o, ta_o = make_lif(k2, num_classes)
    params["fc"] = (W_out, M_out, b_out, tm_o, ta_o)
    return params


if __name__ == "__main__":
    key = jax.random.PRNGKey(0)
    layers = [16, 32]        # one recurrent block: 16 -> 32
    num_classes = 10
    B, T = 2, 8

    key, kx, kp = jax.random.split(key, 3)
    params = init_params(kp, layers, num_classes, sparsity=0.3)
    x = jax.random.normal(kx, (B, T, layers[0]), jnp.float32)

    out = rsnn_forward(x, params, t_chunk=8)
    out = jax.block_until_ready(out)
    assert out.shape == (B, T, num_classes)
    assert bool(jnp.all(jnp.isfinite(out)))
    # TODO(synk): the PyTorch `surrogate` callable is user-supplied; its forward
    # is implemented here as a Heaviside step (spike = 1[u - v_th > 0]); no
    # surrogate-gradient backward is defined, so this kernel is inference-only.
    print("KERNEL_OK")
</pallas_src>

<mosaic_0001>
module attributes {stable_mosaic.version = 11 : i64} {
  func.func @kernel(%arg0: i32, %arg1: i32, %arg2: memref<8x8x128xf32, #tpu.memory_space<vmem>>, %arg3: memref<128x128xbf16, #tpu.memory_space<vmem>>, %arg4: memref<1x128xf32, #tpu.memory_space<vmem>>, %arg5: memref<1x128xf32, #tpu.memory_space<vmem>>, %arg6: memref<1x128xf32, #tpu.memory_space<vmem>>, %arg7: memref<1x128xf32, #tpu.memory_space<vmem>>, %arg8: memref<1x128xf32, #tpu.memory_space<vmem>>, %arg9: memref<128x128xbf16, #tpu.memory_space<vmem>>, %arg10: memref<1x128xf32, #tpu.memory_space<vmem>>, %arg11: memref<1x128xf32, #tpu.memory_space<vmem>>, %arg12: memref<1x128xf32, #tpu.memory_space<vmem>>, %arg13: memref<1x128xf32, #tpu.memory_space<vmem>>, %arg14: memref<1x128xf32, #tpu.memory_space<vmem>>, %arg15: memref<8x8x128xf32, #tpu.memory_space<vmem>>, %arg16: memref<8x128xf32, #tpu.memory_space<vmem>>, %arg17: memref<8x128xf32, #tpu.memory_space<vmem>>, %arg18: memref<8x128xbf16, #tpu.memory_space<vmem>>, %arg19: memref<8x128xf32, #tpu.memory_space<vmem>>, %arg20: memref<8x128xf32, #tpu.memory_space<vmem>>) attributes {dimension_semantics = [#tpu.dimension_semantics<parallel>, #tpu.dimension_semantics<arbitrary>], iteration_bounds = array<i64: 1, 1>, scalar_prefetch = 0 : i64, scratch_operands = 5 : i64, tpu.core_type = #tpu.core_type<tc>, window_params = [{transform_indices = @transform_0, window_bounds = array<i64: 8, 8, 128>}, {pipeline_mode = #tpu.pipeline_mode<synchronous>, transform_indices = @transform_1, window_bounds = array<i64: 128, 128>}, {pipeline_mode = #tpu.pipeline_mode<synchronous>, transform_indices = @transform_2, window_bounds = array<i64: 1, 128>}, {pipeline_mode = #tpu.pipeline_mode<synchronous>, transform_indices = @transform_3, window_bounds = array<i64: 1, 128>}, {pipeline_mode = #tpu.pipeline_mode<synchronous>, transform_indices = @transform_4, window_bounds = array<i64: 1, 128>}, {pipeline_mode = #tpu.pipeline_mode<synchronous>, transform_indices = @transform_5, window_bounds = array<i64: 1, 128>}, {pipeline_mode = #tpu.pipeline_mode<synchronous>, transform_indices = @transform_6, window_bounds = array<i64: 1, 128>}, {pipeline_mode = #tpu.pipeline_mode<synchronous>, transform_indices = @transform_7, window_bounds = array<i64: 128, 128>}, {pipeline_mode = #tpu.pipeline_mode<synchronous>, transform_indices = @transform_8, window_bounds = array<i64: 1, 128>}, {pipeline_mode = #tpu.pipeline_mode<synchronous>, transform_indices = @transform_9, window_bounds = array<i64: 1, 128>}, {pipeline_mode = #tpu.pipeline_mode<synchronous>, transform_indices = @transform_10, window_bounds = array<i64: 1, 128>}, {pipeline_mode = #tpu.pipeline_mode<synchronous>, transform_indices = @transform_11, window_bounds = array<i64: 1, 128>}, {pipeline_mode = #tpu.pipeline_mode<synchronous>, transform_indices = @transform_12, window_bounds = array<i64: 1, 128>}, {transform_indices = @transform_13, window_bounds = array<i64: 8, 8, 128>}]} {
    %c0_i32 = arith.constant 0 : i32
    %0 = arith.cmpi eq, %arg1, %c0_i32 : i32
    %1 = arith.extui %0 : i1 to i32
    %c0_i32_0 = arith.constant 0 : i32
    %2 = arith.cmpi ne, %1, %c0_i32_0 : i32
    scf.if %2 {
      %cst_183 = arith.constant 0.000000e+00 : f32
      %533 = vector.broadcast %cst_183 : f32 to vector<8x128xf32>
      %c0_184 = arith.constant 0 : index
      %c0_185 = arith.constant 0 : index
      %534 = vector.load %arg16[%c0_184, %c0_185] : memref<8x128xf32, #tpu.memory_space<vmem>>, vector<8x128xf32>
      tpu.vector_store %arg16[%c0_184, %c0_185], %533 {strides = array<i32>} : memref<8x128xf32, #tpu.memory_space<vmem>>, vector<8x128xf32>,
      %cst_186 = arith.constant 2.000000e-01 : f32
      %535 = vector.broadcast %cst_186 : f32 to vector<8x128xf32>
      %c0_187 = arith.constant 0 : index
      %c0_188 = arith.constant 0 : index
      %536 = vector.load %arg17[%c0_187, %c0_188] : memref<8x128xf32, #tpu.memory_space<vmem>>, vector<8x128xf32>
      tpu.vector_store %arg17[%c0_187, %c0_188], %535 {strides = array<i32>} : memref<8x128xf32, #tpu.memory_space<vmem>>, vector<8x128xf32>,
      %cst_189 = arith.constant 0.000000e+00 : bf16
      %537 = vector.broadcast %cst_189 : bf16 to vector<8x128xbf16>
      %c0_190 = arith.constant 0 : index
      %c0_191 = arith.constant 0 : index
      %538 = vector.load %arg18[%c0_190, %c0_191] : memref<8x128xbf16, #tpu.memory_space<vmem>>, vector<8x128xbf16>
      tpu.vector_store %arg18[%c0_190, %c0_191], %537 {strides = array<i32>} : memref<8x128xbf16, #tpu.memory_space<vmem>>, vector<8x128xbf16>,
      %cst_192 = arith.constant 0.000000e+00 : f32
      %539 = vector.broadcast %cst_192 : f32 to vector<8x128xf32>
      %c0_193 = arith.constant 0 : index
      %c0_194 = arith.constant 0 : index
      %540 = vector.load %arg19[%c0_193, %c0_194] : memref<8x128xf32, #tpu.memory_space<vmem>>, vector<8x128xf32>
      tpu.vector_store %arg19[%c0_193, %c0_194], %539 {strides = array<i32>} : memref<8x128xf32, #tpu.memory_space<vmem>>, vector<8x128xf32>,
      %cst_195 = arith.constant 2.000000e-01 : f32
      %541 = vector.broadcast %cst_195 : f32 to vector<8x128xf32>
      %c0_196 = arith.constant 0 : index
      %c0_197 = arith.constant 0 : index
      %542 = vector.load %arg20[%c0_196, %c0_197] : memref<8x128xf32, #tpu.memory_space<vmem>>, vector<8x128xf32>
      tpu.vector_store %arg20[%c0_196, %c0_197], %541 {strides = array<i32>} : memref<8x128xf32, #tpu.memory_space<vmem>>, vector<8x128xf32>,
    } else {
    }
    %c0 = arith.constant 0 : index
    %c0_1 = arith.constant 0 : index
    %3 = vector.load %arg3[%c0, %c0_1] : memref<128x128xbf16, #tpu.memory_space<vmem>>, vector<128x128xbf16>
    %c0_2 = arith.constant 0 : index
    %c0_3 = arith.constant 0 : index
    %4 = vector.load %arg4[%c0_2, %c0_3] : memref<1x128xf32, #tpu.memory_space<vmem>>, vector<1x128xf32>
    %c0_4 = arith.constant 0 : index
    %c0_5 = arith.constant 0 : index
    %5 = vector.load %arg5[%c0_4, %c0_5] : memref<1x128xf32, #tpu.memory_space<vmem>>, vector<1x128xf32>
    %c0_6 = arith.constant 0 : index
    %c0_7 = arith.constant 0 : index
    %6 = vector.load %arg6[%c0_6, %c0_7] : memref<1x128xf32, #tpu.memory_space<vmem>>, vector<1x128xf32>
    %c0_8 = arith.constant 0 : index
    %c0_9 = arith.constant 0 : index
    %7 = vector.load %arg7[%c0_8, %c0_9] : memref<1x128xf32, #tpu.memory_space<vmem>>, vector<1x128xf32>
    %c0_10 = arith.constant 0 : index
    %c0_11 = arith.constant 0 : index
    %8 = vector.load %arg8[%c0_10, %c0_11] : memref<1x128xf32, #tpu.memory_space<vmem>>, vector<1x128xf32>
    %c0_12 = arith.constant 0 : index
    %c0_13 = arith.constant 0 : index
    %9 = vector.load %arg9[%c0_12, %c0_13] : memref<128x128xbf16, #tpu.memory_space<vmem>>, vector<128x128xbf16>
    %c0_14 = arith.constant 0 : index
    %c0_15 = arith.constant 0 : index
    %10 = vector.load %arg10[%c0_14, %c0_15] : memref<1x128xf32, #tpu.memory_space<vmem>>, vector<1x128xf32>
    %c0_16 = arith.constant 0 : index
    %c0_17 = arith.constant 0 : index
    %11 = vector.load %arg11[%c0_16, %c0_17] : memref<1x128xf32, #tpu.memory_space<vmem>>, vector<1x128xf32>
    %c0_18 = arith.constant 0 : index
    %c0_19 = arith.constant 0 : index
    %12 = vector.load %arg12[%c0_18, %c0_19] : memref<1x128xf32, #tpu.memory_space<vmem>>, vector<1x128xf32>
    %c0_20 = arith.constant 0 : index
    %c0_21 = arith.constant 0 : index
    %13 = vector.load %arg13[%c0_20, %c0_21] : memref<1x128xf32, #tpu.memory_space<vmem>>, vector<1x128xf32>
    %c0_22 = arith.constant 0 : index
    %c0_23 = arith.constant 0 : index
    %14 = vector.load %arg14[%c0_22, %c0_23] : memref<1x128xf32, #tpu.memory_space<vmem>>, vector<1x128xf32>
    %c0_24 = arith.constant 0 : index
    %c0_25 = arith.constant 0 : index
    %15 = vector.load %arg16[%c0_24, %c0_25] : memref<8x128xf32, #tpu.memory_space<vmem>>, vector<8x128xf32>
    %c0_26 = arith.constant 0 : index
    %c0_27 = arith.constant 0 : index
    %16 = vector.load %arg17[%c0_26, %c0_27] : memref<8x128xf32, #tpu.memory_space<vmem>>, vector<8x128xf32>
    %c0_28 = arith.constant 0 : index
    %c0_29 = arith.constant 0 : index
    %17 = vector.load %arg18[%c0_28, %c0_29] : memref<8x128xbf16, #tpu.memory_space<vmem>>, vector<8x128xbf16>
    %c0_30 = arith.constant 0 : index
    %c0_31 = arith.constant 0 : index
    %18 = vector.load %arg19[%c0_30, %c0_31] : memref<8x128xf32, #tpu.memory_space<vmem>>, vector<8x128xf32>
    %c0_32 = arith.constant 0 : index
    %c0_33 = arith.constant 0 : index
    %19 = vector.load %arg20[%c0_32, %c0_33] : memref<8x128xf32, #tpu.memory_space<vmem>>, vector<8x128xf32>
    %c0_i32_34 = arith.constant 0 : i32
    %20 = arith.cmpi sgt, %arg1, %c0_i32_34 : i32
    %cst = arith.constant 1.000000e+00 : f32
    %cst_35 = arith.constant 0.000000e+00 : f32
    %21 = arith.select %20, %cst, %cst_35 : f32
    %c0_36 = arith.constant 0 : index
    %c0_37 = arith.constant 0 : index
    %c0_38 = arith.constant 0 : index
    %22 = vector.load %arg2[%c0_36, %c0_37, %c0_38] : memref<8x8x128xf32, #tpu.memory_space<vmem>>, vector<1x8x128xf32>
    %23 = vector.shape_cast %22 : vector<1x8x128xf32> to vector<8x128xf32>
    %cst_39 = arith.constant dense<0.000000e+00> : vector<8x128xf32>
    %24 = tpu.matmul %17, %3, %cst_39 {dimension_numbers = #tpu.dot_dimension_numbers<[1], [0], [0], [1], [0, 0, 1, 1], [], []>} : vector<8x128xbf16>, vector<128x128xbf16>, vector<8x128xf32> -> vector<8x128xf32>
    %25 = vector.broadcast %21 : f32 to vector<1x128xf32>
    %26 = arith.mulf %25, %4 : vector<1x128xf32>
    %27 = arith.addf %23, %24 : vector<8x128xf32>
    %28 = vector.broadcast %26 : vector<1x128xf32> to vector<8x128xf32>
    %29 = arith.addf %27, %28 : vector<8x128xf32>
    %30 = vector.broadcast %5 : vector<1x128xf32> to vector<8x128xf32>
    %31 = arith.mulf %15, %30 : vector<8x128xf32>
    %32 = vector.broadcast %6 : vector<1x128xf32> to vector<8x128xf32>
    %33 = arith.mulf %32, %29 : vector<8x128xf32>
    %34 = arith.addf %31, %33 : vector<8x128xf32>
    %cst_40 = arith.constant 1.800000e+00 : f32
    %35 = vector.broadcast %cst_40 : f32 to vector<8x128xf32>
    %36 = arith.mulf %35, %16 : vector<8x128xf32>
    %cst_41 = arith.constant 2.000000e-01 : f32
    %37 = vector.broadcast %cst_41 : f32 to vector<8x128xf32>
    %38 = arith.addf %37, %36 : vector<8x128xf32>
    %39 = arith.subf %34, %38 : vector<8x128xf32>
    %cst_42 = arith.constant 0.000000e+00 : f32
    %40 = vector.broadcast %cst_42 : f32 to vector<8x128xf32>
    %41 = arith.cmpf ogt, %39, %40 : vector<8x128xf32>
    %42 = arith.extui %41 : vector<8x128xi1> to vector<8x128xi32>
    %43 = arith.sitofp %42 : vector<8x128xi32> to vector<8x128xf32>
    %cst_43 = arith.constant 1.800000e+00 : f32
    %44 = vector.broadcast %cst_43 : f32 to vector<8x128xf32>
    %45 = arith.mulf %16, %44 : vector<8x128xf32>
    %cst_44 = arith.constant 2.000000e-01 : f32
    %46 = vector.broadcast %cst_44 : f32 to vector<8x128xf32>
    %47 = arith.addf %45, %46 : vector<8x128xf32>
    %48 = arith.mulf %43, %47 : vector<8x128xf32>
    %49 = arith.subf %34, %48 : vector<8x128xf32>
    %50 = vector.broadcast %7 : vector<1x128xf32> to vector<8x128xf32>
    %51 = arith.mulf %50, %16 : vector<8x128xf32>
    %52 = vector.broadcast %8 : vector<1x128xf32> to vector<8x128xf32>
    %53 = arith.mulf %52, %43 : vector<8x128xf32>
    %54 = arith.addf %51, %53 : vector<8x128xf32>
    %55 = arith.truncf %43 : vector<8x128xf32> to vector<8x128xbf16>
    %cst_45 = arith.constant dense<0.000000e+00> : vector<8x128xf32>
    %56 = tpu.matmul %55, %9, %cst_45 {dimension_numbers = #tpu.dot_dimension_numbers<[1], [0], [0], [1], [0, 0, 1, 1], [], []>} : vector<8x128xbf16>, vector<128x128xbf16>, vector<8x128xf32> -> vector<8x128xf32>
    %57 = vector.broadcast %10 : vector<1x128xf32> to vector<8x128xf32>
    %58 = arith.addf %56, %57 : vector<8x128xf32>
    %59 = vector.broadcast %11 : vector<1x128xf32> to vector<8x128xf32>
    %60 = arith.mulf %18, %59 : vector<8x128xf32>
    %61 = vector.broadcast %12 : vector<1x128xf32> to vector<8x128xf32>
    %62 = arith.mulf %61, %58 : vector<8x128xf32>
    %63 = arith.addf %60, %62 : vector<8x128xf32>
    %cst_46 = arith.constant 1.800000e+00 : f32
    %64 = vector.broadcast %cst_46 : f32 to vector<8x128xf32>
    %65 = arith.mulf %64, %19 : vector<8x128xf32>
    %cst_47 = arith.constant 2.000000e-01 : f32
    %66 = vector.broadcast %cst_47 : f32 to vector<8x128xf32>
    %67 = arith.addf %66, %65 : vector<8x128xf32>
    %68 = arith.subf %63, %67 : vector<8x128xf32>
    %cst_48 = arith.constant 0.000000e+00 : f32
    %69 = vector.broadcast %cst_48 : f32 to vector<8x128xf32>
    %70 = arith.cmpf ogt, %68, %69 : vector<8x128xf32>
    %71 = arith.extui %70 : vector<8x128xi1> to vector<8x128xi32>
    %72 = arith.sitofp %71 : vector<8x128xi32> to vector<8x128xf32>
    %cst_49 = arith.constant 1.800000e+00 : f32
    %73 = vector.broadcast %cst_49 : f32 to vector<8x128xf32>
    %74 = arith.mulf %19, %73 : vector<8x128xf32>
    %cst_50 = arith.constant 2.000000e-01 : f32
    %75 = vector.broadcast %cst_50 : f32 to vector<8x128xf32>
    %76 = arith.addf %74, %75 : vector<8x128xf32>
    %77 = arith.mulf %72, %76 : vector<8x128xf32>
    %78 = arith.subf %63, %77 : vector<8x128xf32>
    %79 = vector.broadcast %13 : vector<1x128xf32> to vector<8x128xf32>
    %80 = arith.mulf %79, %19 : vector<8x128xf32>
    %81 = vector.broadcast %14 : vector<1x128xf32> to vector<8x128xf32>
    %82 = arith.mulf %81, %72 : vector<8x128xf32>
    %83 = arith.addf %80, %82 : vector<8x128xf32>
    %c0_51 = arith.constant 0 : index
    %c0_52 = arith.constant 0 : index
    %c0_53 = arith.constant 0 : index
    %84 = vector.load %arg15[%c0_51, %c0_52, %c0_53] : memref<8x8x128xf32, #tpu.memory_space<vmem>>, vector<1x8x128xf32>
    %85 = vector.shape_cast %84 : vector<1x8x128xf32> to vector<8x128xf32>
    %86 = vector.shape_cast %72 : vector<8x128xf32> to vector<1x8x128xf32>
    tpu.vector_store %arg15[%c0_51, %c0_52, %c0_53], %86 {strides = array<i32>} : memref<8x8x128xf32, #tpu.memory_space<vmem>>, vector<1x8x128xf32>,
    %c1 = arith.constant 1 : index
    %c0_54 = arith.constant 0 : index
    %c0_55 = arith.constant 0 : index
    %87 = vector.load %arg2[%c1, %c0_54, %c0_55] : memref<8x8x128xf32, #tpu.memory_space<vmem>>, vector<1x8x128xf32>
    %88 = vector.shape_cast %87 : vector<1x8x128xf32> to vector<8x128xf32>
    %cst_56 = arith.constant dense<0.000000e+00> : vector<8x128xf32>
    %89 = tpu.matmul %55, %3, %cst_56 {dimension_numbers = #tpu.dot_dimension_numbers<[1], [0], [0], [1], [0, 0, 1, 1], [], []>} : vector<8x128xbf16>, vector<128x128xbf16>, vector<8x128xf32> -> vector<8x128xf32>
    %90 = arith.addf %88, %89 : vector<8x128xf32>
    %91 = vector.broadcast %4 : vector<1x128xf32> to vector<8x128xf32>
    %92 = arith.addf %90, %91 : vector<8x128xf32>
    %93 = vector.broadcast %5 : vector<1x128xf32> to vector<8x128xf32>
    %94 = arith.mulf %49, %93 : vector<8x128xf32>
    %95 = vector.broadcast %6 : vector<1x128xf32> to vector<8x128xf32>
    %96 = arith.mulf %95, %92 : vector<8x128xf32>
    %97 = arith.addf %94, %96 : vector<8x128xf32>
    %cst_57 = arith.constant 1.800000e+00 : f32
    %98 = vector.broadcast %cst_57 : f32 to vector<8x128xf32>
    %99 = arith.mulf %98, %54 : vector<8x128xf32>
    %cst_58 = arith.constant 2.000000e-01 : f32
    %100 = vector.broadcast %cst_58 : f32 to vector<8x128xf32>
    %101 = arith.addf %100, %99 : vector<8x128xf32>
    %102 = arith.subf %97, %101 : vector<8x128xf32>
    %cst_59 = arith.constant 0.000000e+00 : f32
    %103 = vector.broadcast %cst_59 : f32 to vector<8x128xf32>
    %104 = arith.cmpf ogt, %102, %103 : vector<8x128xf32>
    %105 = arith.extui %104 : vector<8x128xi1> to vector<8x128xi32>
    %106 = arith.sitofp %105 : vector<8x128xi32> to vector<8x128xf32>
    %cst_60 = arith.constant 1.800000e+00 : f32
    %107 = vector.broadcast %cst_60 : f32 to vector<8x128xf32>
    %108 = arith.mulf %54, %107 : vector<8x128xf32>
    %cst_61 = arith.constant 2.000000e-01 : f32
    %109 = vector.broadcast %cst_61 : f32 to vector<8x128xf32>
    %110 = arith.addf %108, %109 : vector<8x128xf32>
    %111 = arith.mulf %106, %110 : vector<8x128xf32>
    %112 = arith.subf %97, %111 : vector<8x128xf32>
    %113 = vector.broadcast %7 : vector<1x128xf32> to vector<8x128xf32>
    %114 = arith.mulf %113, %54 : vector<8x128xf32>
    %115 = vector.broadcast %8 : vector<1x128xf32> to vector<8x128xf32>
    %116 = arith.mulf %115, %106 : vector<8x128xf32>
    %117 = arith.addf %114, %116 : vector<8x128xf32>
    %118 = arith.truncf %106 : vector<8x128xf32> to vector<8x128xbf16>
    %cst_62 = arith.constant dense<0.000000e+00> : vector<8x128xf32>
    %119 = tpu.matmul %118, %9, %cst_62 {dimension_numbers = #tpu.dot_dimension_numbers<[1], [0], [0], [1], [0, 0, 1, 1], [], []>} : vector<8x128xbf16>, vector<128x128xbf16>, vector<8x128xf32> -> vector<8x128xf32>
    %120 = vector.broadcast %10 : vector<1x128xf32> to vector<8x128xf32>
    %121 = arith.addf %119, %120 : vector<8x128xf32>
    %122 = vector.broadcast %11 : vector<1x128xf32> to vector<8x128xf32>
    %123 = arith.mulf %78, %122 : vector<8x128xf32>
    %124 = vector.broadcast %12 : vector<1x128xf32> to vector<8x128xf32>
    %125 = arith.mulf %124, %121 : vector<8x128xf32>
    %126 = arith.addf %123, %125 : vector<8x128xf32>
    %cst_63 = arith.constant 1.800000e+00 : f32
    %127 = vector.broadcast %cst_63 : f32 to vector<8x128xf32>
    %128 = arith.mulf %127, %83 : vector<8x128xf32>
    %cst_64 = arith.constant 2.000000e-01 : f32
    %129 = vector.broadcast %cst_64 : f32 to vector<8x128xf32>
    %130 = arith.addf %129, %128 : vector<8x128xf32>
    %131 = arith.subf %126, %130 : vector<8x128xf32>
    %cst_65 = arith.constant 0.000000e+00 : f32
    %132 = vector.broadcast %cst_65 : f32 to vector<8x128xf32>
    %133 = arith.cmpf ogt, %131, %132 : vector<8x128xf32>
    %134 = arith.extui %133 : vector<8x128xi1> to vector<8x128xi32>
    %135 = arith.sitofp %134 : vector<8x128xi32> to vector<8x128xf32>
    %cst_66 = arith.constant 1.800000e+00 : f32
    %136 = vector.broadcast %cst_66 : f32 to vector<8x128xf32>
    %137 = arith.mulf %83, %136 : vector<8x128xf32>
    %cst_67 = arith.constant 2.000000e-01 : f32
    %138 = vector.broadcast %cst_67 : f32 to vector<8x128xf32>
    %139 = arith.addf %137, %138 : vector<8x128xf32>
    %140 = arith.mulf %135, %139 : vector<8x128xf32>
    %141 = arith.subf %126, %140 : vector<8x128xf32>
    %142 = vector.broadcast %13 : vector<1x128xf32> to vector<8x128xf32>
    %143 = arith.mulf %142, %83 : vector<8x128xf32>
    %144 = vector.broadcast %14 : vector<1x128xf32> to vector<8x128xf32>
    %145 = arith.mulf %144, %135 : vector<8x128xf32>
    %146 = arith.addf %143, %145 : vector<8x128xf32>
    %c1_68 = arith.constant 1 : index
    %c0_69 = arith.constant 0 : index
    %c0_70 = arith.constant 0 : index
    %147 = vector.load %arg15[%c1_68, %c0_69, %c0_70] : memref<8x8x128xf32, #tpu.memory_space<vmem>>, vector<1x8x128xf32>
    %148 = vector.shape_cast %147 : vector<1x8x128xf32> to vector<8x128xf32>
    %149 = vector.shape_cast %135 : vector<8x128xf32> to vector<1x8x128xf32>
    tpu.vector_store %arg15[%c1_68, %c0_69, %c0_70], %149 {strides = array<i32>} : memref<8x8x128xf32, #tpu.memory_space<vmem>>, vector<1x8x128xf32>,
    %c2 = arith.constant 2 : index
    %c0_71 = arith.constant 0 : index
    %c0_72 = arith.constant 0 : index
    %150 = vector.load %arg2[%c2, %c0_71, %c0_72] : memref<8x8x128xf32, #tpu.memory_space<vmem>>, vector<1x8x128xf32>
    %151 = vector.shape_cast %150 : vector<1x8x128xf32> to vector<8x128xf32>
    %cst_73 = arith.constant dense<0.000000e+00> : vector<8x128xf32>
    %152 = tpu.matmul %118, %3, %cst_73 {dimension_numbers = #tpu.dot_dimension_numbers<[1], [0], [0], [1], [0, 0, 1, 1], [], []>} : vector<8x128xbf16>, vector<128x128xbf16>, vector<8x128xf32> -> vector<8x128xf32>
    %153 = arith.addf %151, %152 : vector<8x128xf32>
    %154 = vector.broadcast %4 : vector<1x128xf32> to vector<8x128xf32>
    %155 = arith.addf %153, %154 : vector<8x128xf32>
    %156 = vector.broadcast %5 : vector<1x128xf32> to vector<8x128xf32>
    %157 = arith.mulf %112, %156 : vector<8x128xf32>
    %158 = vector.broadcast %6 : vector<1x128xf32> to vector<8x128xf32>
    %159 = arith.mulf %158, %155 : vector<8x128xf32>
    %160 = arith.addf %157, %159 : vector<8x128xf32>
    %cst_74 = arith.constant 1.800000e+00 : f32
    %161 = vector.broadcast %cst_74 : f32 to vector<8x128xf32>
    %162 = arith.mulf %161, %117 : vector<8x128xf32>
    %cst_75 = arith.constant 2.000000e-01 : f32
    %163 = vector.broadcast %cst_75 : f32 to vector<8x128xf32>
    %164 = arith.addf %163, %162 : vector<8x128xf32>
    %165 = arith.subf %160, %164 : vector<8x128xf32>
    %cst_76 = arith.constant 0.000000e+00 : f32
    %166 = vector.broadcast %cst_76 : f32 to vector<8x128xf32>
    %167 = arith.cmpf ogt, %165, %166 : vector<8x128xf32>
    %168 = arith.extui %167 : vector<8x128xi1> to vector<8x128xi32>
    %169 = arith.sitofp %168 : vector<8x128xi32> to vector<8x128xf32>
    %cst_77 = arith.constant 1.800000e+00 : f32
    %170 = vector.broadcast %cst_77 : f32 to vector<8x128xf32>
    %171 = arith.mulf %117, %170 : vector<8x128xf32>
    %cst_78 = arith.constant 2.000000e-01 : f32
    %172 = vector.broadcast %cst_78 : f32 to vector<8x128xf32>
    %173 = arith.addf %171, %172 : vector<8x128xf32>
    %174 = arith.mulf %169, %173 : vector<8x128xf32>
    %175 = arith.subf %160, %174 : vector<8x128xf32>
    %176 = vector.broadcast %7 : vector<1x128xf32> to vector<8x128xf32>
    %177 = arith.mulf %176, %117 : vector<8x128xf32>
    %178 = vector.broadcast %8 : vector<1x128xf32> to vector<8x128xf32>
    %179 = arith.mulf %178, %169 : vector<8x128xf32>
    %180 = arith.addf %177, %179 : vector<8x128xf32>
    %181 = arith.truncf %169 : vector<8x128xf32> to vector<8x128xbf16>
    %cst_79 = arith.constant dense<0.000000e+00> : vector<8x128xf32>
    %182 = tpu.matmul %181, %9, %cst_79 {dimension_numbers = #tpu.dot_dimension_numbers<[1], [0], [0], [1], [0, 0, 1, 1], [], []>} : vector<8x128xbf16>, vector<128x128xbf16>, vector<8x128xf32> -> vector<8x128xf32>
    %183 = vector.broadcast %10 : vector<1x128xf32> to vector<8x128xf32>
    %184 = arith.addf %182, %183 : vector<8x128xf32>
    %185 = vector.broadcast %11 : vector<1x128xf32> to vector<8x128xf32>
    %186 = arith.mulf %141, %185 : vector<8x128xf32>
    %187 = vector.broadcast %12 : vector<1x128xf32> to vector<8x128xf32>
    %188 = arith.mulf %187, %184 : vector<8x128xf32>
    %189 = arith.addf %186, %188 : vector<8x128xf32>
    %cst_80 = arith.constant 1.800000e+00 : f32
    %190 = vector.broadcast %cst_80 : f32 to vector<8x128xf32>
    %191 = arith.mulf %190, %146 : vector<8x128xf32>
    %cst_81 = arith.constant 2.000000e-01 : f32
    %192 = vector.broadcast %cst_81 : f32 to vector<8x128xf32>
    %193 = arith.addf %192, %191 : vector<8x128xf32>
    %194 = arith.subf %189, %193 : vector<8x128xf32>
    %cst_82 = arith.constant 0.000000e+00 : f32
    %195 = vector.broadcast %cst_82 : f32 to vector<8x128xf32>
    %196 = arith.cmpf ogt, %194, %195 : vector<8x128xf32>
    %197 = arith.extui %196 : vector<8x128xi1> to vector<8x128xi32>
    %198 = arith.sitofp %197 : vector<8x128xi32> to vector<8x128xf32>
    %cst_83 = arith.constant 1.800000e+00 : f32
    %199 = vector.broadcast %cst_83 : f32 to vector<8x128xf32>
    %200 = arith.mulf %146, %199 : vector<8x128xf32>
    %cst_84 = arith.constant 2.000000e-01 : f32
    %201 = vector.broadcast %cst_84 : f32 to vector<8x128xf32>
    %202 = arith.addf %200, %201 : vector<8x128xf32>
    %203 = arith.mulf %198, %202 : vector<8x128xf32>
    %204 = arith.subf %189, %203 : vector<8x128xf32>
    %205 = vector.broadcast %13 : vector<1x128xf32> to vector<8x128xf32>
    %206 = arith.mulf %205, %146 : vector<8x128xf32>
    %207 = vector.broadcast %14 : vector<1x128xf32> to vector<8x128xf32>
    %208 = arith.mulf %207, %198 : vector<8x128xf32>
    %209 = arith.addf %206, %208 : vector<8x128xf32>
    %c2_85 = arith.constant 2 : index
    %c0_86 = arith.constant 0 : index
    %c0_87 = arith.constant 0 : index
    %210 = vector.load %arg15[%c2_85, %c0_86, %c0_87] : memref<8x8x128xf32, #tpu.memory_space<vmem>>, vector<1x8x128xf32>
    %211 = vector.shape_cast %210 : vector<1x8x128xf32> to vector<8x128xf32>
    %212 = vector.shape_cast %198 : vector<8x128xf32> to vector<1x8x128xf32>
    tpu.vector_store %arg15[%c2_85, %c0_86, %c0_87], %212 {strides = array<i32>} : memref<8x8x128xf32, #tpu.memory_space<vmem>>, vector<1x8x128xf32>,
    %c3 = arith.constant 3 : index
    %c0_88 = arith.constant 0 : index
    %c0_89 = arith.constant 0 : index
    %213 = vector.load %arg2[%c3, %c0_88, %c0_89] : memref<8x8x128xf32, #tpu.memory_space<vmem>>, vector<1x8x128xf32>
    %214 = vector.shape_cast %213 : vector<1x8x128xf32> to vector<8x128xf32>
    %cst_90 = arith.constant dense<0.000000e+00> : vector<8x128xf32>
    %215 = tpu.matmul %181, %3, %cst_90 {dimension_numbers = #tpu.dot_dimension_numbers<[1], [0], [0], [1], [0, 0, 1, 1], [], []>} : vector<8x128xbf16>, vector<128x128xbf16>, vector<8x128xf32> -> vector<8x128xf32>
    %216 = arith.addf %214, %215 : vector<8x128xf32>
    %217 = vector.broadcast %4 : vector<1x128xf32> to vector<8x128xf32>
    %218 = arith.addf %216, %217 : vector<8x128xf32>
    %219 = vector.broadcast %5 : vector<1x128xf32> to vector<8x128xf32>
    %220 = arith.mulf %175, %219 : vector<8x128xf32>
    %221 = vector.broadcast %6 : vector<1x128xf32> to vector<8x128xf32>
    %222 = arith.mulf %221, %218 : vector<8x128xf32>
    %223 = arith.addf %220, %222 : vector<8x128xf32>
    %cst_91 = arith.constant 1.800000e+00 : f32
    %224 = vector.broadcast %cst_91 : f32 to vector<8x128xf32>
    %225 = arith.mulf %224, %180 : vector<8x128xf32>
    %cst_92 = arith.constant 2.000000e-01 : f32
    %226 = vector.broadcast %cst_92 : f32 to vector<8x128xf32>
    %227 = arith.addf %226, %225 : vector<8x128xf32>
    %228 = arith.subf %223, %227 : vector<8x128xf32>
    %cst_93 = arith.constant 0.000000e+00 : f32
    %229 = vector.broadcast %cst_93 : f32 to vector<8x128xf32>
    %230 = arith.cmpf ogt, %228, %229 : vector<8x128xf32>
    %231 = arith.extui %230 : vector<8x128xi1> to vector<8x128xi32>
    %232 = arith.sitofp %231 : vector<8x128xi32> to vector<8x128xf32>
    %cst_94 = arith.constant 1.800000e+00 : f32
    %233 = vector.broadcast %cst_94 : f32 to vector<8x128xf32>
    %234 = arith.mulf %180, %233 : vector<8x128xf32>
    %cst_95 = arith.constant 2.000000e-01 : f32
    %235 = vector.broadcast %cst_95 : f32 to vector<8x128xf32>
    %236 = arith.addf %234, %235 : vector<8x128xf32>
    %237 = arith.mulf %232, %236 : vector<8x128xf32>
    %238 = arith.subf %223, %237 : vector<8x128xf32>
    %239 = vector.broadcast %7 : vector<1x128xf32> to vector<8x128xf32>
    %240 = arith.mulf %239, %180 : vector<8x128xf32>
    %241 = vector.broadcast %8 : vector<1x128xf32> to vector<8x128xf32>
    %242 = arith.mulf %241, %232 : vector<8x128xf32>
    %243 = arith.addf %240, %242 : vector<8x128xf32>
    %244 = arith.truncf %232 : vector<8x128xf32> to vector<8x128xbf16>
    %cst_96 = arith.constant dense<0.000000e+00> : vector<8x128xf32>
    %245 = tpu.matmul %244, %9, %cst_96 {dimension_numbers = #tpu.dot_dimension_numbers<[1], [0], [0], [1], [0, 0, 1, 1], [], []>} : vector<8x128xbf16>, vector<128x128xbf16>, vector<8x128xf32> -> vector<8x128xf32>
    %246 = vector.broadcast %10 : vector<1x128xf32> to vector<8x128xf32>
    %247 = arith.addf %245, %246 : vector<8x128xf32>
    %248 = vector.broadcast %11 : vector<1x128xf32> to vector<8x128xf32>
    %249 = arith.mulf %204, %248 : vector<8x128xf32>
    %250 = vector.broadcast %12 : vector<1x128xf32> to vector<8x128xf32>
    %251 = arith.mulf %250, %247 : vector<8x128xf32>
    %252 = arith.addf %249, %251 : vector<8x128xf32>
    %cst_97 = arith.constant 1.800000e+00 : f32
    %253 = vector.broadcast %cst_97 : f32 to vector<8x128xf32>
    %254 = arith.mulf %253, %209 : vector<8x128xf32>
    %cst_98 = arith.constant 2.000000e-01 : f32
    %255 = vector.broadcast %cst_98 : f32 to vector<8x128xf32>
    %256 = arith.addf %255, %254 : vector<8x128xf32>
    %257 = arith.subf %252, %256 : vector<8x128xf32>
    %cst_99 = arith.constant 0.000000e+00 : f32
    %258 = vector.broadcast %cst_99 : f32 to vector<8x128xf32>
    %259 = arith.cmpf ogt, %257, %258 : vector<8x128xf32>
    %260 = arith.extui %259 : vector<8x128xi1> to vector<8x128xi32>
    %261 = arith.sitofp %260 : vector<8x128xi32> to vector<8x128xf32>
    %cst_100 = arith.constant 1.800000e+00 : f32
    %262 = vector.broadcast %cst_100 : f32 to vector<8x128xf32>
    %263 = arith.mulf %209, %262 : vector<8x128xf32>
    %cst_101 = arith.constant 2.000000e-01 : f32
    %264 = vector.broadcast %cst_101 : f32 to vector<8x128xf32>
    %265 = arith.addf %263, %264 : vector<8x128xf32>
    %266 = arith.mulf %261, %265 : vector<8x128xf32>
    %267 = arith.subf %252, %266 : vector<8x128xf32>
    %268 = vector.broadcast %13 : vector<1x128xf32> to vector<8x128xf32>
    %269 = arith.mulf %268, %209 : vector<8x128xf32>
    %270 = vector.broadcast %14 : vector<1x128xf32> to vector<8x128xf32>
    %271 = arith.mulf %270, %261 : vector<8x128xf32>
    %272 = arith.addf %269, %271 : vector<8x128xf32>
    %c3_102 = arith.constant 3 : index
    %c0_103 = arith.constant 0 : index
    %c0_104 = arith.constant 0 : index
    %273 = vector.load %arg15[%c3_102, %c0_103, %c0_104] : memref<8x8x128xf32, #tpu.memory_space<vmem>>, vector<1x8x128xf32>
    %274 = vector.shape_cast %273 : vector<1x8x128xf32> to vector<8x128xf32>
    %275 = vector.shape_cast %261 : vector<8x128xf32> to vector<1x8x128xf32>
    tpu.vector_store %arg15[%c3_102, %c0_103, %c0_104], %275 {strides = array<i32>} : memref<8x8x128xf32, #tpu.memory_space<vmem>>, vector<1x8x128xf32>,
    %c4 = arith.constant 4 : index
    %c0_105 = arith.constant 0 : index
    %c0_106 = arith.constant 0 : index
    %276 = vector.load %arg2[%c4, %c0_105, %c0_106] : memref<8x8x128xf32, #tpu.memory_space<vmem>>, vector<1x8x128xf32>
    %277 = vector.shape_cast %276 : vector<1x8x128xf32> to vector<8x128xf32>
    %cst_107 = arith.constant dense<0.000000e+00> : vector<8x128xf32>
    %278 = tpu.matmul %244, %3, %cst_107 {dimension_numbers = #tpu.dot_dimension_numbers<[1], [0], [0], [1], [0, 0, 1, 1], [], []>} : vector<8x128xbf16>, vector<128x128xbf16>, vector<8x128xf32> -> vector<8x128xf32>
    %279 = arith.addf %277, %278 : vector<8x128xf32>
    %280 = vector.broadcast %4 : vector<1x128xf32> to vector<8x128xf32>
    %281 = arith.addf %279, %280 : vector<8x128xf32>
    %282 = vector.broadcast %5 : vector<1x128xf32> to vector<8x128xf32>
    %283 = arith.mulf %238, %282 : vector<8x128xf32>
    %284 = vector.broadcast %6 : vector<1x128xf32> to vector<8x128xf32>
    %285 = arith.mulf %284, %281 : vector<8x128xf32>
    %286 = arith.addf %283, %285 : vector<8x128xf32>
    %cst_108 = arith.constant 1.800000e+00 : f32
    %287 = vector.broadcast %cst_108 : f32 to vector<8x128xf32>
    %288 = arith.mulf %287, %243 : vector<8x128xf32>
    %cst_109 = arith.constant 2.000000e-01 : f32
    %289 = vector.broadcast %cst_109 : f32 to vector<8x128xf32>
    %290 = arith.addf %289, %288 : vector<8x128xf32>
    %291 = arith.subf %286, %290 : vector<8x128xf32>
    %cst_110 = arith.constant 0.000000e+00 : f32
    %292 = vector.broadcast %cst_110 : f32 to vector<8x128xf32>
    %293 = arith.cmpf ogt, %291, %292 : vector<8x128xf32>
    %294 = arith.extui %293 : vector<8x128xi1> to vector<8x128xi32>
    %295 = arith.sitofp %294 : vector<8x128xi32> to vector<8x128xf32>
    %cst_111 = arith.constant 1.800000e+00 : f32
    %296 = vector.broadcast %cst_111 : f32 to vector<8x128xf32>
    %297 = arith.mulf %243, %296 : vector<8x128xf32>
    %cst_112 = arith.constant 2.000000e-01 : f32
    %298 = vector.broadcast %cst_112 : f32 to vector<8x128xf32>
    %299 = arith.addf %297, %298 : vector<8x128xf32>
    %300 = arith.mulf %295, %299 : vector<8x128xf32>
    %301 = arith.subf %286, %300 : vector<8x128xf32>
    %302 = vector.broadcast %7 : vector<1x128xf32> to vector<8x128xf32>
    %303 = arith.mulf %302, %243 : vector<8x128xf32>
    %304 = vector.broadcast %8 : vector<1x128xf32> to vector<8x128xf32>
    %305 = arith.mulf %304, %295 : vector<8x128xf32>
    %306 = arith.addf %303, %305 : vector<8x128xf32>
    %307 = arith.truncf %295 : vector<8x128xf32> to vector<8x128xbf16>
    %cst_113 = arith.constant dense<0.000000e+00> : vector<8x128xf32>
    %308 = tpu.matmul %307, %9, %cst_113 {dimension_numbers = #tpu.dot_dimension_numbers<[1], [0], [0], [1], [0, 0, 1, 1], [], []>} : vector<8x128xbf16>, vector<128x128xbf16>, vector<8x128xf32> -> vector<8x128xf32>
    %309 = vector.broadcast %10 : vector<1x128xf32> to vector<8x128xf32>
    %310 = arith.addf %308, %309 : vector<8x128xf32>
    %311 = vector.broadcast %11 : vector<1x128xf32> to vector<8x128xf32>
    %312 = arith.mulf %267, %311 : vector<8x128xf32>
    %313 = vector.broadcast %12 : vector<1x128xf32> to vector<8x128xf32>
    %314 = arith.mulf %313, %310 : vector<8x128xf32>
    %315 = arith.addf %312, %314 : vector<8x128xf32>
    %cst_114 = arith.constant 1.800000e+00 : f32
    %316 = vector.broadcast %cst_114 : f32 to vector<8x128xf32>
    %317 = arith.mulf %316, %272 : vector<8x128xf32>
    %cst_115 = arith.constant 2.000000e-01 : f32
    %318 = vector.broadcast %cst_115 : f32 to vector<8x128xf32>
    %319 = arith.addf %318, %317 : vector<8x128xf32>
    %320 = arith.subf %315, %319 : vector<8x128xf32>
    %cst_116 = arith.constant 0.000000e+00 : f32
    %321 = vector.broadcast %cst_116 : f32 to vector<8x128xf32>
    %322 = arith.cmpf ogt, %320, %321 : vector<8x128xf32>
    %323 = arith.extui %322 : vector<8x128xi1> to vector<8x128xi32>
    %324 = arith.sitofp %323 : vector<8x128xi32> to vector<8x128xf32>
    %cst_117 = arith.constant 1.800000e+00 : f32
    %325 = vector.broadcast %cst_117 : f32 to vector<8x128xf32>
    %326 = arith.mulf %272, %325 : vector<8x128xf32>
    %cst_118 = arith.constant 2.000000e-01 : f32
    %327 = vector.broadcast %cst_118 : f32 to vector<8x128xf32>
    %328 = arith.addf %326, %327 : vector<8x128xf32>
    %329 = arith.mulf %324, %328 : vector<8x128xf32>
    %330 = arith.subf %315, %329 : vector<8x128xf32>
    %331 = vector.broadcast %13 : vector<1x128xf32> to vector<8x128xf32>
    %332 = arith.mulf %331, %272 : vector<8x128xf32>
    %333 = vector.broadcast %14 : vector<1x128xf32> to vector<8x128xf32>
    %334 = arith.mulf %333, %324 : vector<8x128xf32>
    %335 = arith.addf %332, %334 : vector<8x128xf32>
    %c4_119 = arith.constant 4 : index
    %c0_120 = arith.constant 0 : index
    %c0_121 = arith.constant 0 : index
    %336 = vector.load %arg15[%c4_119, %c0_120, %c0_121] : memref<8x8x128xf32, #tpu.memory_space<vmem>>, vector<1x8x128xf32>
    %337 = vector.shape_cast %336 : vector<1x8x128xf32> to vector<8x128xf32>
    %338 = vector.shape_cast %324 : vector<8x128xf32> to vector<1x8x128xf32>
    tpu.vector_store %arg15[%c4_119, %c0_120, %c0_121], %338 {strides = array<i32>} : memref<8x8x128xf32, #tpu.memory_space<vmem>>, vector<1x8x128xf32>,
    %c5 = arith.constant 5 : index
    %c0_122 = arith.constant 0 : index
    %c0_123 = arith.constant 0 : index
    %339 = vector.load %arg2[%c5, %c0_122, %c0_123] : memref<8x8x128xf32, #tpu.memory_space<vmem>>, vector<1x8x128xf32>
    %340 = vector.shape_cast %339 : vector<1x8x128xf32> to vector<8x128xf32>
    %cst_124 = arith.constant dense<0.000000e+00> : vector<8x128xf32>
    %341 = tpu.matmul %307, %3, %cst_124 {dimension_numbers = #tpu.dot_dimension_numbers<[1], [0], [0], [1], [0, 0, 1, 1], [], []>} : vector<8x128xbf16>, vector<128x128xbf16>, vector<8x128xf32> -> vector<8x128xf32>
    %342 = arith.addf %340, %341 : vector<8x128xf32>
    %343 = vector.broadcast %4 : vector<1x128xf32> to vector<8x128xf32>
    %344 = arith.addf %342, %343 : vector<8x128xf32>
    %345 = vector.broadcast %5 : vector<1x128xf32> to vector<8x128xf32>
    %346 = arith.mulf %301, %345 : vector<8x128xf32>
    %347 = vector.broadcast %6 : vector<1x128xf32> to vector<8x128xf32>
    %348 = arith.mulf %347, %344 : vector<8x128xf32>
    %349 = arith.addf %346, %348 : vector<8x128xf32>
    %cst_125 = arith.constant 1.800000e+00 : f32
    %350 = vector.broadcast %cst_125 : f32 to vector<8x128xf32>
    %351 = arith.mulf %350, %306 : vector<8x128xf32>
    %cst_126 = arith.constant 2.000000e-01 : f32
    %352 = vector.broadcast %cst_126 : f32 to vector<8x128xf32>
    %353 = arith.addf %352, %351 : vector<8x128xf32>
    %354 = arith.subf %349, %353 : vector<8x128xf32>
    %cst_127 = arith.constant 0.000000e+00 : f32
    %355 = vector.broadcast %cst_127 : f32 to vector<8x128xf32>
    %356 = arith.cmpf ogt, %354, %355 : vector<8x128xf32>
    %357 = arith.extui %356 : vector<8x128xi1> to vector<8x128xi32>
    %358 = arith.sitofp %357 : vector<8x128xi32> to vector<8x128xf32>
    %cst_128 = arith.constant 1.800000e+00 : f32
    %359 = vector.broadcast %cst_128 : f32 to vector<8x128xf32>
    %360 = arith.mulf %306, %359 : vector<8x128xf32>
    %cst_129 = arith.constant 2.000000e-01 : f32
    %361 = vector.broadcast %cst_129 : f32 to vector<8x128xf32>
    %362 = arith.addf %360, %361 : vector<8x128xf32>
    %363 = arith.mulf %358, %362 : vector<8x128xf32>
    %364 = arith.subf %349, %363 : vector<8x128xf32>
    %365 = vector.broadcast %7 : vector<1x128xf32> to vector<8x128xf32>
    %366 = arith.mulf %365, %306 : vector<8x128xf32>
    %367 = vector.broadcast %8 : vector<1x128xf32> to vector<8x128xf32>
    %368 = arith.mulf %367, %358 : vector<8x128xf32>
    %369 = arith.addf %366, %368 : vector<8x128xf32>
    %370 = arith.truncf %358 : vector<8x128xf32> to vector<8x128xbf16>
    %cst_130 = arith.constant dense<0.000000e+00> : vector<8x128xf32>
    %371 = tpu.matmul %370, %9, %cst_130 {dimension_numbers = #tpu.dot_dimension_numbers<[1], [0], [0], [1], [0, 0, 1, 1], [], []>} : vector<8x128xbf16>, vector<128x128xbf16>, vector<8x128xf32> -> vector<8x128xf32>
    %372 = vector.broadcast %10 : vector<1x128xf32> to vector<8x128xf32>
    %373 = arith.addf %371, %372 : vector<8x128xf32>
    %374 = vector.broadcast %11 : vector<1x128xf32> to vector<8x128xf32>
    %375 = arith.mulf %330, %374 : vector<8x128xf32>
    %376 = vector.broadcast %12 : vector<1x128xf32> to vector<8x128xf32>
    %377 = arith.mulf %376, %373 : vector<8x128xf32>
    %378 = arith.addf %375, %377 : vector<8x128xf32>
    %cst_131 = arith.constant 1.800000e+00 : f32
    %379 = vector.broadcast %cst_131 : f32 to vector<8x128xf32>
    %380 = arith.mulf %379, %335 : vector<8x128xf32>
    %cst_132 = arith.constant 2.000000e-01 : f32
    %381 = vector.broadcast %cst_132 : f32 to vector<8x128xf32>
    %382 = arith.addf %381, %380 : vector<8x128xf32>
    %383 = arith.subf %378, %382 : vector<8x128xf32>
    %cst_133 = arith.constant 0.000000e+00 : f32
    %384 = vector.broadcast %cst_133 : f32 to vector<8x128xf32>
    %385 = arith.cmpf ogt, %383, %384 : vector<8x128xf32>
    %386 = arith.extui %385 : vector<8x128xi1> to vector<8x128xi32>
    %387 = arith.sitofp %386 : vector<8x128xi32> to vector<8x128xf32>
    %cst_134 = arith.constant 1.800000e+00 : f32
    %388 = vector.broadcast %cst_134 : f32 to vector<8x128xf32>
    %389 = arith.mulf %335, %388 : vector<8x128xf32>
    %cst_135 = arith.constant 2.000000e-01 : f32
    %390 = vector.broadcast %cst_135 : f32 to vector<8x128xf32>
    %391 = arith.addf %389, %390 : vector<8x128xf32>
    %392 = arith.mulf %387, %391 : vector<8x128xf32>
    %393 = arith.subf %378, %392 : vector<8x128xf32>
    %394 = vector.broadcast %13 : vector<1x128xf32> to vector<8x128xf32>
    %395 = arith.mulf %394, %335 : vector<8x128xf32>
    %396 = vector.broadcast %14 : vector<1x128xf32> to vector<8x128xf32>
    %397 = arith.mulf %396, %387 : vector<8x128xf32>
    %398 = arith.addf %395, %397 : vector<8x128xf32>
    %c5_136 = arith.constant 5 : index
    %c0_137 = arith.constant 0 : index
    %c0_138 = arith.constant 0 : index
    %399 = vector.load %arg15[%c5_136, %c0_137, %c0_138] : memref<8x8x128xf32, #tpu.memory_space<vmem>>, vector<1x8x128xf32>
    %400 = vector.shape_cast %399 : vector<1x8x128xf32> to vector<8x128xf32>
    %401 = vector.shape_cast %387 : vector<8x128xf32> to vector<1x8x128xf32>
    tpu.vector_store %arg15[%c5_136, %c0_137, %c0_138], %401 {strides = array<i32>} : memref<8x8x128xf32, #tpu.memory_space<vmem>>, vector<1x8x128xf32>,
    %c6 = arith.constant 6 : index
    %c0_139 = arith.constant 0 : index
    %c0_140 = arith.constant 0 : index
    %402 = vector.load %arg2[%c6, %c0_139, %c0_140] : memref<8x8x128xf32, #tpu.memory_space<vmem>>, vector<1x8x128xf32>
    %403 = vector.shape_cast %402 : vector<1x8x128xf32> to vector<8x128xf32>
    %cst_141 = arith.constant dense<0.000000e+00> : vector<8x128xf32>
    %404 = tpu.matmul %370, %3, %cst_141 {dimension_numbers = #tpu.dot_dimension_numbers<[1], [0], [0], [1], [0, 0, 1, 1], [], []>} : vector<8x128xbf16>, vector<128x128xbf16>, vector<8x128xf32> -> vector<8x128xf32>
    %405 = arith.addf %403, %404 : vector<8x128xf32>
    %406 = vector.broadcast %4 : vector<1x128xf32> to vector<8x128xf32>
    %407 = arith.addf %405, %406 : vector<8x128xf32>
    %408 = vector.broadcast %5 : vector<1x128xf32> to vector<8x128xf32>
    %409 = arith.mulf %364, %408 : vector<8x128xf32>
    %410 = vector.broadcast %6 : vector<1x128xf32> to vector<8x128xf32>
    %411 = arith.mulf %410, %407 : vector<8x128xf32>
    %412 = arith.addf %409, %411 : vector<8x128xf32>
    %cst_142 = arith.constant 1.800000e+00 : f32
    %413 = vector.broadcast %cst_142 : f32 to vector<8x128xf32>
    %414 = arith.mulf %413, %369 : vector<8x128xf32>
    %cst_143 = arith.constant 2.000000e-01 : f32
    %415 = vector.broadcast %cst_143 : f32 to vector<8x128xf32>
    %416 = arith.addf %415, %414 : vector<8x128xf32>
    %417 = arith.subf %412, %416 : vector<8x128xf32>
    %cst_144 = arith.constant 0.000000e+00 : f32
    %418 = vector.broadcast %cst_144 : f32 to vector<8x128xf32>
    %419 = arith.cmpf ogt, %417, %418 : vector<8x128xf32>
    %420 = arith.extui %419 : vector<8x128xi1> to vector<8x128xi32>
    %421 = arith.sitofp %420 : vector<8x128xi32> to vector<8x128xf32>
    %cst_145 = arith.constant 1.800000e+00 : f32
    %422 = vector.broadcast %cst_145 : f32 to vector<8x128xf32>
    %423 = arith.mulf %369, %422 : vector<8x128xf32>
    %cst_146 = arith.constant 2.000000e-01 : f32
    %424 = vector.broadcast %cst_146 : f32 to vector<8x128xf32>
    %425 = arith.addf %423, %424 : vector<8x128xf32>
    %426 = arith.mulf %421, %425 : vector<8x128xf32>
    %427 = arith.subf %412, %426 : vector<8x128xf32>
    %428 = vector.broadcast %7 : vector<1x128xf32> to vector<8x128xf32>
    %429 = arith.mulf %428, %369 : vector<8x128xf32>
    %430 = vector.broadcast %8 : vector<1x128xf32> to vector<8x128xf32>
    %431 = arith.mulf %430, %421 : vector<8x128xf32>
    %432 = arith.addf %429, %431 : vector<8x128xf32>
    %433 = arith.truncf %421 : vector<8x128xf32> to vector<8x128xbf16>
    %cst_147 = arith.constant dense<0.000000e+00> : vector<8x128xf32>
    %434 = tpu.matmul %433, %9, %cst_147 {dimension_numbers = #tpu.dot_dimension_numbers<[1], [0], [0], [1], [0, 0, 1, 1], [], []>} : vector<8x128xbf16>, vector<128x128xbf16>, vector<8x128xf32> -> vector<8x128xf32>
    %435 = vector.broadcast %10 : vector<1x128xf32> to vector<8x128xf32>
    %436 = arith.addf %434, %435 : vector<8x128xf32>
    %437 = vector.broadcast %11 : vector<1x128xf32> to vector<8x128xf32>
    %438 = arith.mulf %393, %437 : vector<8x128xf32>
    %439 = vector.broadcast %12 : vector<1x128xf32> to vector<8x128xf32>
    %440 = arith.mulf %439, %436 : vector<8x128xf32>
    %441 = arith.addf %438, %440 : vector<8x128xf32>
    %cst_148 = arith.constant 1.800000e+00 : f32
    %442 = vector.broadcast %cst_148 : f32 to vector<8x128xf32>
    %443 = arith.mulf %442, %398 : vector<8x128xf32>
    %cst_149 = arith.constant 2.000000e-01 : f32
    %444 = vector.broadcast %cst_149 : f32 to vector<8x128xf32>
    %445 = arith.addf %444, %443 : vector<8x128xf32>
    %446 = arith.subf %441, %445 : vector<8x128xf32>
    %cst_150 = arith.constant 0.000000e+00 : f32
    %447 = vector.broadcast %cst_150 : f32 to vector<8x128xf32>
    %448 = arith.cmpf ogt, %446, %447 : vector<8x128xf32>
    %449 = arith.extui %448 : vector<8x128xi1> to vector<8x128xi32>
    %450 = arith.sitofp %449 : vector<8x128xi32> to vector<8x128xf32>
    %cst_151 = arith.constant 1.800000e+00 : f32
    %451 = vector.broadcast %cst_151 : f32 to vector<8x128xf32>
    %452 = arith.mulf %398, %451 : vector<8x128xf32>
    %cst_152 = arith.constant 2.000000e-01 : f32
    %453 = vector.broadcast %cst_152 : f32 to vector<8x128xf32>
    %454 = arith.addf %452, %453 : vector<8x128xf32>
    %455 = arith.mulf %450, %454 : vector<8x128xf32>
    %456 = arith.subf %441, %455 : vector<8x128xf32>
    %457 = vector.broadcast %13 : vector<1x128xf32> to vector<8x128xf32>
    %458 = arith.mulf %457, %398 : vector<8x128xf32>
    %459 = vector.broadcast %14 : vector<1x128xf32> to vector<8x128xf32>
    %460 = arith.mulf %459, %450 : vector<8x128xf32>
    %461 = arith.addf %458, %460 : vector<8x128xf32>
    %c6_153 = arith.constant 6 : index
    %c0_154 = arith.constant 0 : index
    %c0_155 = arith.constant 0 : index
    %462 = vector.load %arg15[%c6_153, %c0_154, %c0_155] : memref<8x8x128xf32, #tpu.memory_space<vmem>>, vector<1x8x128xf32>
    %463 = vector.shape_cast %462 : vector<1x8x128xf32> to vector<8x128xf32>
    %464 = vector.shape_cast %450 : vector<8x128xf32> to vector<1x8x128xf32>
    tpu.vector_store %arg15[%c6_153, %c0_154, %c0_155], %464 {strides = array<i32>} : memref<8x8x128xf32, #tpu.memory_space<vmem>>, vector<1x8x128xf32>,
    %c7 = arith.constant 7 : index
    %c0_156 = arith.constant 0 : index
    %c0_157 = arith.constant 0 : index
    %465 = vector.load %arg2[%c7, %c0_156, %c0_157] : memref<8x8x128xf32, #tpu.memory_space<vmem>>, vector<1x8x128xf32>
    %466 = vector.shape_cast %465 : vector<1x8x128xf32> to vector<8x128xf32>
    %cst_158 = arith.constant dense<0.000000e+00> : vector<8x128xf32>
    %467 = tpu.matmul %433, %3, %cst_158 {dimension_numbers = #tpu.dot_dimension_numbers<[1], [0], [0], [1], [0, 0, 1, 1], [], []>} : vector<8x128xbf16>, vector<128x128xbf16>, vector<8x128xf32> -> vector<8x128xf32>
    %468 = arith.addf %466, %467 : vector<8x128xf32>
    %469 = vector.broadcast %4 : vector<1x128xf32> to vector<8x128xf32>
    %470 = arith.addf %468, %469 : vector<8x128xf32>
    %471 = vector.broadcast %5 : vector<1x128xf32> to vector<8x128xf32>
    %472 = arith.mulf %427, %471 : vector<8x128xf32>
    %473 = vector.broadcast %6 : vector<1x128xf32> to vector<8x128xf32>
    %474 = arith.mulf %473, %470 : vector<8x128xf32>
    %475 = arith.addf %472, %474 : vector<8x128xf32>
    %cst_159 = arith.constant 1.800000e+00 : f32
    %476 = vector.broadcast %cst_159 : f32 to vector<8x128xf32>
    %477 = arith.mulf %476, %432 : vector<8x128xf32>
    %cst_160 = arith.constant 2.000000e-01 : f32
    %478 = vector.broadcast %cst_160 : f32 to vector<8x128xf32>
    %479 = arith.addf %478, %477 : vector<8x128xf32>
    %480 = arith.subf %475, %479 : vector<8x128xf32>
    %cst_161 = arith.constant 0.000000e+00 : f32
    %481 = vector.broadcast %cst_161 : f32 to vector<8x128xf32>
    %482 = arith.cmpf ogt, %480, %481 : vector<8x128xf32>
    %483 = arith.extui %482 : vector<8x128xi1> to vector<8x128xi32>
    %484 = arith.sitofp %483 : vector<8x128xi32> to vector<8x128xf32>
    %cst_162 = arith.constant 1.800000e+00 : f32
    %485 = vector.broadcast %cst_162 : f32 to vector<8x128xf32>
    %486 = arith.mulf %432, %485 : vector<8x128xf32>
    %cst_163 = arith.constant 2.000000e-01 : f32
    %487 = vector.broadcast %cst_163 : f32 to vector<8x128xf32>
    %488 = arith.addf %486, %487 : vector<8x128xf32>
    %489 = arith.mulf %484, %488 : vector<8x128xf32>
    %490 = arith.subf %475, %489 : vector<8x128xf32>
    %491 = vector.broadcast %7 : vector<1x128xf32> to vector<8x128xf32>
    %492 = arith.mulf %491, %432 : vector<8x128xf32>
    %493 = vector.broadcast %8 : vector<1x128xf32> to vector<8x128xf32>
    %494 = arith.mulf %493, %484 : vector<8x128xf32>
    %495 = arith.addf %492, %494 : vector<8x128xf32>
    %496 = arith.truncf %484 : vector<8x128xf32> to vector<8x128xbf16>
    %cst_164 = arith.constant dense<0.000000e+00> : vector<8x128xf32>
    %497 = tpu.matmul %496, %9, %cst_164 {dimension_numbers = #tpu.dot_dimension_numbers<[1], [0], [0], [1], [0, 0, 1, 1], [], []>} : vector<8x128xbf16>, vector<128x128xbf16>, vector<8x128xf32> -> vector<8x128xf32>
    %498 = vector.broadcast %10 : vector<1x128xf32> to vector<8x128xf32>
    %499 = arith.addf %497, %498 : vector<8x128xf32>
    %500 = vector.broadcast %11 : vector<1x128xf32> to vector<8x128xf32>
    %501 = arith.mulf %456, %500 : vector<8x128xf32>
    %502 = vector.broadcast %12 : vector<1x128xf32> to vector<8x128xf32>
    %503 = arith.mulf %502, %499 : vector<8x128xf32>
    %504 = arith.addf %501, %503 : vector<8x128xf32>
    %cst_165 = arith.constant 1.800000e+00 : f32
    %505 = vector.broadcast %cst_165 : f32 to vector<8x128xf32>
    %506 = arith.mulf %505, %461 : vector<8x128xf32>
    %cst_166 = arith.constant 2.000000e-01 : f32
    %507 = vector.broadcast %cst_166 : f32 to vector<8x128xf32>
    %508 = arith.addf %507, %506 : vector<8x128xf32>
    %509 = arith.subf %504, %508 : vector<8x128xf32>
    %cst_167 = arith.constant 0.000000e+00 : f32
    %510 = vector.broadcast %cst_167 : f32 to vector<8x128xf32>
    %511 = arith.cmpf ogt, %509, %510 : vector<8x128xf32>
    %512 = arith.extui %511 : vector<8x128xi1> to vector<8x128xi32>
    %513 = arith.sitofp %512 : vector<8x128xi32> to vector<8x128xf32>
    %cst_168 = arith.constant 1.800000e+00 : f32
    %514 = vector.broadcast %cst_168 : f32 to vector<8x128xf32>
    %515 = arith.mulf %461, %514 : vector<8x128xf32>
    %cst_169 = arith.constant 2.000000e-01 : f32
    %516 = vector.broadcast %cst_169 : f32 to vector<8x128xf32>
    %517 = arith.addf %515, %516 : vector<8x128xf32>
    %518 = arith.mulf %513, %517 : vector<8x128xf32>
    %519 = arith.subf %504, %518 : vector<8x128xf32>
    %520 = vector.broadcast %13 : vector<1x128xf32> to vector<8x128xf32>
    %521 = arith.mulf %520, %461 : vector<8x128xf32>
    %522 = vector.broadcast %14 : vector<1x128xf32> to vector<8x128xf32>
    %523 = arith.mulf %522, %513 : vector<8x128xf32>
    %524 = arith.addf %521, %523 : vector<8x128xf32>
    %c7_170 = arith.constant 7 : index
    %c0_171 = arith.constant 0 : index
    %c0_172 = arith.constant 0 : index
    %525 = vector.load %arg15[%c7_170, %c0_171, %c0_172] : memref<8x8x128xf32, #tpu.memory_space<vmem>>, vector<1x8x128xf32>
    %526 = vector.shape_cast %525 : vector<1x8x128xf32> to vector<8x128xf32>
    %527 = vector.shape_cast %513 : vector<8x128xf32> to vector<1x8x128xf32>
    tpu.vector_store %arg15[%c7_170, %c0_171, %c0_172], %527 {strides = array<i32>} : memref<8x8x128xf32, #tpu.memory_space<vmem>>, vector<1x8x128xf32>,
    %c0_173 = arith.constant 0 : index
    %c0_174 = arith.constant 0 : index
    %528 = vector.load %arg16[%c0_173, %c0_174] : memref<8x128xf32, #tpu.memory_space<vmem>>, vector<8x128xf32>
    tpu.vector_store %arg16[%c0_173, %c0_174], %490 {strides = array<i32>} : memref<8x128xf32, #tpu.memory_space<vmem>>, vector<8x128xf32>,
    %c0_175 = arith.constant 0 : index
    %c0_176 = arith.constant 0 : index
    %529 = vector.load %arg17[%c0_175, %c0_176] : memref<8x128xf32, #tpu.memory_space<vmem>>, vector<8x128xf32>
    tpu.vector_store %arg17[%c0_175, %c0_176], %495 {strides = array<i32>} : memref<8x128xf32, #tpu.memory_space<vmem>>, vector<8x128xf32>,
    %c0_177 = arith.constant 0 : index
    %c0_178 = arith.constant 0 : index
    %530 = vector.load %arg18[%c0_177, %c0_178] : memref<8x128xbf16, #tpu.memory_space<vmem>>, vector<8x128xbf16>
    tpu.vector_store %arg18[%c0_177, %c0_178], %496 {strides = array<i32>} : memref<8x128xbf16, #tpu.memory_space<vmem>>, vector<8x128xbf16>,
    %c0_179 = arith.constant 0 : index
    %c0_180 = arith.constant 0 : index
    %531 = vector.load %arg19[%c0_179, %c0_180] : memref<8x128xf32, #tpu.memory_space<vmem>>, vector<8x128xf32>
    tpu.vector_store %arg19[%c0_179, %c0_180], %519 {strides = array<i32>} : memref<8x128xf32, #tpu.memory_space<vmem>>, vector<8x128xf32>,
    %c0_181 = arith.constant 0 : index
    %c0_182 = arith.constant 0 : index
    %532 = vector.load %arg20[%c0_181, %c0_182] : memref<8x128xf32, #tpu.memory_space<vmem>>, vector<8x128xf32>
    tpu.vector_store %arg20[%c0_181, %c0_182], %524 {strides = array<i32>} : memref<8x128xf32, #tpu.memory_space<vmem>>, vector<8x128xf32>,
    return
  }
  func.func @transform_0(%arg0: i32, %arg1: i32) -> (i32, i32, i32) {
    %c0_i32 = arith.constant 0 : i32
    %c0_i32_0 = arith.constant 0 : i32
    return %arg1, %arg0, %c0_i32 : i32, i32, i32
  }
  func.func @transform_1(%arg0: i32, %arg1: i32) -> (i32, i32) {
    %c0_i32 = arith.constant 0 : i32
    %c0_i32_0 = arith.constant 0 : i32
    %c0_i32_1 = arith.constant 0 : i32
    return %c0_i32, %c0_i32_0 : i32, i32
  }
  func.func @transform_2(%arg0: i32, %arg1: i32) -> (i32, i32) {
    %c0_i32 = arith.constant 0 : i32
    %c0_i32_0 = arith.constant 0 : i32
    %c0_i32_1 = arith.constant 0 : i32
    return %c0_i32, %c0_i32_0 : i32, i32
  }
  func.func @transform_3(%arg0: i32, %arg1: i32) -> (i32, i32) {
    %c0_i32 = arith.constant 0 : i32
    %c0_i32_0 = arith.constant 0 : i32
    %c0_i32_1 = arith.constant 0 : i32
    return %c0_i32, %c0_i32_0 : i32, i32
  }
  func.func @transform_4(%arg0: i32, %arg1: i32) -> (i32, i32) {
    %c0_i32 = arith.constant 0 : i32
    %c0_i32_0 = arith.constant 0 : i32
    %c0_i32_1 = arith.constant 0 : i32
    return %c0_i32, %c0_i32_0 : i32, i32
  }
  func.func @transform_5(%arg0: i32, %arg1: i32) -> (i32, i32) {
    %c0_i32 = arith.constant 0 : i32
    %c0_i32_0 = arith.constant 0 : i32
    %c0_i32_1 = arith.constant 0 : i32
    return %c0_i32, %c0_i32_0 : i32, i32
  }
  func.func @transform_6(%arg0: i32, %arg1: i32) -> (i32, i32) {
    %c0_i32 = arith.constant 0 : i32
    %c0_i32_0 = arith.constant 0 : i32
    %c0_i32_1 = arith.constant 0 : i32
    return %c0_i32, %c0_i32_0 : i32, i32
  }
  func.func @transform_7(%arg0: i32, %arg1: i32) -> (i32, i32) {
    %c0_i32 = arith.constant 0 : i32
    %c0_i32_0 = arith.constant 0 : i32
    %c0_i32_1 = arith.constant 0 : i32
    return %c0_i32, %c0_i32_0 : i32, i32
  }
  func.func @transform_8(%arg0: i32, %arg1: i32) -> (i32, i32) {
    %c0_i32 = arith.constant 0 : i32
    %c0_i32_0 = arith.constant 0 : i32
    %c0_i32_1 = arith.constant 0 : i32
    return %c0_i32, %c0_i32_0 : i32, i32
  }
  func.func @transform_9(%arg0: i32, %arg1: i32) -> (i32, i32) {
    %c0_i32 = arith.constant 0 : i32
    %c0_i32_0 = arith.constant 0 : i32
    %c0_i32_1 = arith.constant 0 : i32
    return %c0_i32, %c0_i32_0 : i32, i32
  }
  func.func @transform_10(%arg0: i32, %arg1: i32) -> (i32, i32) {
    %c0_i32 = arith.constant 0 : i32
    %c0_i32_0 = arith.constant 0 : i32
    %c0_i32_1 = arith.constant 0 : i32
    return %c0_i32, %c0_i32_0 : i32, i32
  }
  func.func @transform_11(%arg0: i32, %arg1: i32) -> (i32, i32) {
    %c0_i32 = arith.constant 0 : i32
    %c0_i32_0 = arith.constant 0 : i32
    %c0_i32_1 = arith.constant 0 : i32
    return %c0_i32, %c0_i32_0 : i32, i32
  }
  func.func @transform_12(%arg0: i32, %arg1: i32) -> (i32, i32) {
    %c0_i32 = arith.constant 0 : i32
    %c0_i32_0 = arith.constant 0 : i32
    %c0_i32_1 = arith.constant 0 : i32
    return %c0_i32, %c0_i32_0 : i32, i32
  }
  func.func @transform_13(%arg0: i32, %arg1: i32) -> (i32, i32, i32) {
    %c0_i32 = arith.constant 0 : i32
    %c0_i32_0 = arith.constant 0 : i32
    return %arg1, %arg0, %c0_i32 : i32, i32, i32
  }
}

</mosaic_0001>

<llo_original>
// kernel: tpu_custom_call.1
$region0: #{tpu_custom_call.1}
  #allocation0 [shape = 'u32[]', space=smem, size = 0x4, offset = 0x4, fixed_abs, tag = 'smem constant byte address 0x4 - core index']
  #allocation1 [shape = 'u32[72,128]{1,0:T(1,128)}', space=vmem, size = 0x9000, scoped, tag = 'internal scratch']
  #allocation2 [shape = 'f32[8,128]{1,0:T(8,128)}', space=vmem, size = 0x1000, scoped, tag = 'scratch operand']
  #allocation3 [shape = 'f32[8,128]{1,0:T(8,128)}', space=vmem, size = 0x1000, scoped, tag = 'scratch operand']
  #allocation4 [shape = 'bf16[8,128]{1,0:T(8,128)(2,1)}', space=vmem, size = 0x800, scoped, tag = 'scratch operand']
  #allocation5 [shape = 'f32[8,128]{1,0:T(8,128)}', space=vmem, size = 0x1000, scoped, tag = 'scratch operand']
  #allocation6 [shape = 'f32[8,128]{1,0:T(8,128)}', space=vmem, size = 0x1000, scoped, tag = 'scratch operand']
  %s0 = inlined_call_operand.hbm [shape: f32[8,8,128], index: 0, kind: input, shape index: {}]
  %s1 = inlined_call_operand.hbm [shape: bf16[128,128], index: 1, kind: input, shape index: {}]
  %s2 = inlined_call_operand.vmem [shape: f32[1,128], index: 2, kind: input, shape index: {}]
  %s3 = inlined_call_operand.vmem [shape: f32[1,128], index: 3, kind: input, shape index: {}]
  %s4 = inlined_call_operand.vmem [shape: f32[1,128], index: 4, kind: input, shape index: {}]
  %s5 = inlined_call_operand.vmem [shape: f32[1,128], index: 5, kind: input, shape index: {}]
  %s6 = inlined_call_operand.vmem [shape: f32[1,128], index: 6, kind: input, shape index: {}]
  %s7 = inlined_call_operand.hbm [shape: bf16[128,128], index: 7, kind: input, shape index: {}]
  %s8 = inlined_call_operand.vmem [shape: f32[1,128], index: 8, kind: input, shape index: {}]
  %s9 = inlined_call_operand.vmem [shape: f32[1,128], index: 9, kind: input, shape index: {}]
  %s10 = inlined_call_operand.vmem [shape: f32[1,128], index: 10, kind: input, shape index: {}]
  %s11 = inlined_call_operand.vmem [shape: f32[1,128], index: 11, kind: input, shape index: {}]
  %s12 = inlined_call_operand.vmem [shape: f32[1,128], index: 12, kind: input, shape index: {}]
  %s13 = inlined_call_operand.hbm [shape: f32[8,8,128], index: 13, kind: output, shape index: {}]
  %s14 = sld [smem:[#allocation0]]
  $region78: #{tpu_custom_call.1} parent=0
    _
  %s16 = ssub.s32 1, %s14
  %s17 = scalar_select 0, %s16, %s14
  $region1: #{tpu_custom_call.1} parent=0
    #allocation7 [shape = 'u8[32768]{0}', space=vmem, size = 0x8000, scoped, tag = 'input window, operand 0, single buffered']
    #allocation8 [shape = 's32[1]{0}', space=sflag, size = 0x4, scoped, tag = 'scoped memory for tpu_custom_call.1']
    #allocation9 [shape = 's32[1]{0}', space=sflag, size = 0x4, scoped, tag = 'scoped memory for tpu_custom_call.1']
    #allocation10 [shape = 'u8[32768]{0}', space=vmem, size = 0x8000, scoped, tag = 'input window, operand 1, single buffered']
    #allocation11 [shape = 's32[1]{0}', space=sflag, size = 0x4, scoped, tag = 'scoped memory for tpu_custom_call.1']
    #allocation12 [shape = 'u8[32768]{0}', space=vmem, size = 0x8000, scoped, tag = 'input window, operand 7, single buffered']
    #allocation13 [shape = 'u8[32768]{0}', space=vmem, size = 0x8000, scoped, tag = 'output window, operand 0, single buffered']
    %18 = vsyncpa [#allocation8], 0
    %19 = vsyncpa [#allocation11], 0
    %20 = vsyncpa [#allocation9], 0
    // Predicated region
    $region2: #{tpu_custom_call.1} parent=1 // pred_check
      _
    $region3: #{tpu_custom_call.1} parent=1 // pred_check_branch
      %22 = sbr.rel (0) target = $region5
    $region4: #{tpu_custom_call.1} parent=1 // pred_region
      %24 = vsyncadd [#allocation8], 0
      %s25 = sshll.u32 %s0, 4
      %s26 = int_to_ptr.hbm [resolvable:$true] %s25
      %s27 = sshll.u32 [#allocation7], 4
      %s28 = int_to_ptr.vmem [resolvable:$true] %s27
      %33 = dma.hbm_to_vmem [thread:$0]  %s26, 1024, %s28, [#allocation8], 128, 128, 8
    $region5: #{tpu_custom_call.1} parent=1 // pred_fallthru
      _
    // Predicated region
    $region6: #{tpu_custom_call.1} parent=1 // pred_check
      _
    $region7: #{tpu_custom_call.1} parent=1 // pred_check_branch
      %35 = sbr.rel (0) target = $region9
    $region8: #{tpu_custom_call.1} parent=1 // pred_region
      %37 = vsyncadd [#allocation11], 0
      %s38 = sshll.u32 %s1, 4
      %s39 = int_to_ptr.hbm [resolvable:$true] %s38
      %s40 = sshll.u32 [#allocation10], 4
      %s41 = int_to_ptr.vmem [resolvable:$true] %s40
      %46 = dma.hbm_to_vmem [thread:$0]  %s39, 1024, %s41, [#allocation11], 64, 64, 4
    $region9: #{tpu_custom_call.1} parent=1 // pred_fallthru
      _
    // Predicated region
    $region10: #{tpu_custom_call.1} parent=1 // pred_check
      _
    $region11: #{tpu_custom_call.1} parent=1 // pred_check_branch
      %48 = sbr.rel (0) target = $region13
    $region12: #{tpu_custom_call.1} parent=1 // pred_region
      _
    $region13: #{tpu_custom_call.1} parent=1 // pred_fallthru
      _
    // Predicated region
    $region14: #{tpu_custom_call.1} parent=1 // pred_check
      _
    $region15: #{tpu_custom_call.1} parent=1 // pred_check_branch
      %50 = sbr.rel (0) target = $region17
    $region16: #{tpu_custom_call.1} parent=1 // pred_region
      _
    $region17: #{tpu_custom_call.1} parent=1 // pred_fallthru
      _
    // Predicated region
    $region18: #{tpu_custom_call.1} parent=1 // pred_check
      _
    $region19: #{tpu_custom_call.1} parent=1 // pred_check_branch
      %52 = sbr.rel (0) target = $region21
    $region20: #{tpu_custom_call.1} parent=1 // pred_region
      _
    $region21: #{tpu_custom_call.1} parent=1 // pred_fallthru
      _
    // Predicated region
    $region22: #{tpu_custom_call.1} parent=1 // pred_check
      _
    $region23: #{tpu_custom_call.1} parent=1 // pred_check_branch
      %54 = sbr.rel (0) target = $region25
    $region24: #{tpu_custom_call.1} parent=1 // pred_region
      _
    $region25: #{tpu_custom_call.1} parent=1 // pred_fallthru
      _
    // Predicated region
    $region26: #{tpu_custom_call.1} parent=1 // pred_check
      _
    $region27: #{tpu_custom_call.1} parent=1 // pred_check_branch
      %56 = sbr.rel (0) target = $region29
    $region28: #{tpu_custom_call.1} parent=1 // pred_region
      _
    $region29: #{tpu_custom_call.1} parent=1 // pred_fallthru
      _
    // Predicated region
    $region30: #{tpu_custom_call.1} parent=1 // pred_check
      _
    $region31: #{tpu_custom_call.1} parent=1 // pred_check_branch
      %58 = sbr.rel (0) target = $region33
    $region32: #{tpu_custom_call.1} parent=1 // pred_region
      %60 = vsyncadd [#allocation11], 0
      %s61 = sshll.u32 %s7, 4
      %s62 = int_to_ptr.hbm [resolvable:$true] %s61
      %s63 = sshll.u32 [#allocation12], 4
      %s64 = int_to_ptr.vmem [resolvable:$true] %s63
      %69 = dma.hbm_to_vmem [thread:$0]  %s62, 1024, %s64, [#allocation11], 64, 64, 4
    $region33: #{tpu_custom_call.1} parent=1 // pred_fallthru
      _
    // Predicated region
    $region34: #{tpu_custom_call.1} parent=1 // pred_check
      _
    $region35: #{tpu_custom_call.1} parent=1 // pred_check_branch
      %71 = sbr.rel (0) target = $region37
    $region36: #{tpu_custom_call.1} parent=1 // pred_region
      _
    $region37: #{tpu_custom_call.1} parent=1 // pred_fallthru
      _
    // Predicated region
    $region38: #{tpu_custom_call.1} parent=1 // pred_check
      _
    $region39: #{tpu_custom_call.1} parent=1 // pred_check_branch
      %73 = sbr.rel (0) target = $region41
    $region40: #{tpu_custom_call.1} parent=1 // pred_region
      _
    $region41: #{tpu_custom_call.1} parent=1 // pred_fallthru
      _
    // Predicated region
    $region42: #{tpu_custom_call.1} parent=1 // pred_check
      _
    $region43: #{tpu_custom_call.1} parent=1 // pred_check_branch
      %75 = sbr.rel (0) target = $region45
    $region44: #{tpu_custom_call.1} parent=1 // pred_region
      _
    $region45: #{tpu_custom_call.1} parent=1 // pred_fallthru
      _
    // Predicated region
    $region46: #{tpu_custom_call.1} parent=1 // pred_check
      _
    $region47: #{tpu_custom_call.1} parent=1 // pred_check_branch
      %77 = sbr.rel (0) target = $region49
    $region48: #{tpu_custom_call.1} parent=1 // pred_region
      _
    $region49: #{tpu_custom_call.1} parent=1 // pred_fallthru
      _
    // Predicated region
    $region50: #{tpu_custom_call.1} parent=1 // pred_check
      _
    $region51: #{tpu_custom_call.1} parent=1 // pred_check_branch
      %79 = sbr.rel (0) target = $region53
    $region52: #{tpu_custom_call.1} parent=1 // pred_region
      _
    $region53: #{tpu_custom_call.1} parent=1 // pred_fallthru
      _
    // Predicated region
    $region54: #{tpu_custom_call.1} parent=1 // pred_check
      _
    $region55: #{tpu_custom_call.1} parent=1 // pred_check_branch
      %81 = sbr.rel (0) target = $region57
    $region56: #{tpu_custom_call.1} parent=1 // pred_region
      %83 = dma.done [#allocation8], 1024
    $region57: #{tpu_custom_call.1} parent=1 // pred_fallthru
      _
    // Predicated region
    $region58: #{tpu_custom_call.1} parent=1 // pred_check
      _
    $region59: #{tpu_custom_call.1} parent=1 // pred_check_branch
      %85 = sbr.rel (0) target = $region61
    $region60: #{tpu_custom_call.1} parent=1 // pred_region
      %87 = dma.done [#allocation11], 1024
    $region61: #{tpu_custom_call.1} parent=1 // pred_fallthru
      _
    // Predicated region
    $region62: #{tpu_custom_call.1} parent=1 // pred_check
      _
    $region63: #{tpu_custom_call.1} parent=1 // pred_check_branch
      %89 = sbr.rel (0) target = $region65
    $region64: #{tpu_custom_call.1} parent=1 // pred_region
      %91 = dma.done [#allocation11], 1024
    $region65: #{tpu_custom_call.1} parent=1 // pred_fallthru
      _
    %p93 = scmp.eq.s32.totalorder 0, 0
    // Predicated region
    $region66: #{tpu_custom_call.1} parent=1 // pred_check
      %p94 = pneg %p93
    $region67: #{tpu_custom_call.1} parent=1 // pred_check_branch
      %96 = sbr.rel (%p94) target = $region69
    $region68: #{tpu_custom_call.1} parent=1 // pred_region
      %97 = vst [vmem:[#allocation2] sm:$0xff] 0.0
      %98 = vst [vmem:[#allocation3] sm:$0xff] 0.2
      %99 = vst [vmem:[#allocation4] sm:$0xf] 0
      %100 = vst [vmem:[#allocation5] sm:$0xff] 0.0
      %101 = vst [vmem:[#allocation6] sm:$0xff] 0.2
    $region69: #{tpu_custom_call.1} parent=1 // pred_fallthru
      _
    %v102 = vld [vmem:[#allocation10] sm:$0xf]
    %v103 = vld [vmem:[#allocation10 + $0x4] sm:$0xf]
    %v104 = vld [vmem:[#allocation10 + $0x8] sm:$0xf]
    %v105 = vld [vmem:[#allocation10 + $0xc] sm:$0xf]
    %v106 = vld [vmem:[#allocation10 + $0x10] sm:$0xf]
    %v107 = vld [vmem:[#allocation10 + $0x14] sm:$0xf]
    %v108 = vld [vmem:[#allocation10 + $0x18] sm:$0xf]
    %v109 = vld [vmem:[#allocation10 + $0x1c] sm:$0xf]
    %v110 = vld [vmem:[#allocation10 + $0x20] sm:$0xf]
    %v111 = vld [vmem:[#allocation10 + $0x24] sm:$0xf]
    %v112 = vld [vmem:[#allocation10 + $0x28] sm:$0xf]
    %v113 = vld [vmem:[#allocation10 + $0x2c] sm:$0xf]
    %v114 = vld [vmem:[#allocation10 + $0x30] sm:$0xf]
    %v115 = vld [vmem:[#allocation10 + $0x34] sm:$0xf]
    %v116 = vld [vmem:[#allocation10 + $0x38] sm:$0xf]
    %v117 = vld [vmem:[#allocation10 + $0x3c] sm:$0xf]
    %v118 = vld [vmem:[%s2] sm:$0x1]
    %v119 = vld [vmem:[%s3] sm:$0x1]
    %v120 = vld [vmem:[%s4] sm:$0x1]
    %v121 = vld [vmem:[%s5] sm:$0x1]
    %v122 = vld [vmem:[%s6] sm:$0x1]
    %v123 = vld [vmem:[#allocation12] sm:$0xf]
    %v124 = vld [vmem:[#allocation12 + $0x4] sm:$0xf]
    %v125 = vld [vmem:[#allocation12 + $0x8] sm:$0xf]
    %v126 = vld [vmem:[#allocation12 + $0xc] sm:$0xf]
    %v127 = vld [vmem:[#allocation12 + $0x10] sm:$0xf]
    %v128 = vld [vmem:[#allocation12 + $0x14] sm:$0xf]
    %v129 = vld [vmem:[#allocation12 + $0x18] sm:$0xf]
    %v130 = vld [vmem:[#allocation12 + $0x1c] sm:$0xf]
    %v131 = vld [vmem:[#allocation12 + $0x20] sm:$0xf]
    %v132 = vld [vmem:[#allocation12 + $0x24] sm:$0xf]
    %v133 = vld [vmem:[#allocation12 + $0x28] sm:$0xf]
    %v134 = vld [vmem:[#allocation12 + $0x2c] sm:$0xf]
    %v135 = vld [vmem:[#allocation12 + $0x30] sm:$0xf]
    %v136 = vld [vmem:[#allocation12 + $0x34] sm:$0xf]
    %v137 = vld [vmem:[#allocation12 + $0x38] sm:$0xf]
    %v138 = vld [vmem:[#allocation12 + $0x3c] sm:$0xf]
    %v139 = vld [vmem:[%s8] sm:$0x1]
    %v140 = vld [vmem:[%s9] sm:$0x1]
    %v141 = vld [vmem:[%s10] sm:$0x1]
    %v142 = vld [vmem:[%s11] sm:$0x1]
    %v143 = vld [vmem:[%s12] sm:$0x1]
    %v144 = vld [vmem:[#allocation2] sm:$0xff]
    %v145 = vld [vmem:[#allocation3] sm:$0xff]
    %v146 = vld [vmem:[#allocation4] sm:$0xf]
    %v147 = vld [vmem:[#allocation5] sm:$0xff]
    %v148 = vld [vmem:[#allocation6] sm:$0xff]
    %p149 = scmp.gt.s32.totalorder 0, 0
    %s150 = scalar_select %p149, 1.0, 0.0
    %v151 = vld [vmem:[#allocation7] sm:$0xff]
    %v168 = vunpack.c.l.b16 %v102
    %v169 = vunpack.c.l.b16 %v103
    %v170 = vunpack.c.l.b16 %v104
    %v171 = vunpack.c.l.b16 %v105
    %v172 = vunpack.c.l.b16 %v106
    %v173 = vunpack.c.l.b16 %v107
    %v174 = vunpack.c.l.b16 %v108
    %v175 = vunpack.c.l.b16 %v109
    %v176 = vunpack.c.l.b16 %v110
    %v177 = vunpack.c.l.b16 %v111
    %v178 = vunpack.c.l.b16 %v112
    %v179 = vunpack.c.l.b16 %v113
    %v180 = vunpack.c.l.b16 %v114
    %v181 = vunpack.c.l.b16 %v115
    %v182 = vunpack.c.l.b16 %v116
    %v183 = vunpack.c.l.b16 %v117
    %v184 = vpack.c.b16 %v169, %v168
    %v185 = vpack.c.b16 %v171, %v170
    %v186 = vpack.c.b16 %v173, %v172
    %v187 = vpack.c.b16 %v175, %v174
    %v188 = vpack.c.b16 %v177, %v176
    %v189 = vpack.c.b16 %v179, %v178
    %v190 = vpack.c.b16 %v181, %v180
    %v191 = vpack.c.b16 %v183, %v182
    %200 = vmatpush.bf16.msra.mxu0 %v191
    %201 = vmatpush.bf16.msra.mxu0 %v190
    %202 = vmatpush.bf16.msra.mxu0 %v189
    %203 = vmatpush.bf16.msra.mxu0 %v188
    %204 = vmatpush.bf16.msra.mxu0 %v187
    %205 = vmatpush.bf16.msra.mxu0 %v186
    %206 = vmatpush.bf16.msra.mxu0 %v185
    %207 = vmatpush.bf16.msra.mxu0 %v184
    %208 = vmatmul.bf16.gmra.mxu0 %v146
    %v209 = vpop.f32.mrf.mxu0
    %v210 = vadd.f32 0.0, %v209
    %v211 = vpop.f32.mrf.mxu0
    %212 = vdwg.mxu0
    %v213 = vstv %s150
    %v214 = vmul.f32 %v213, %v118
    %v215 = vadd.f32 %v151, %v210
    %v217 = vperm.slane %v214, 0
    %v219 = vadd.f32 %v215, %v217
    %v221 = vperm.slane %v119, 0
    %v223 = vmul.f32 %v144, %v221
    %v225 = vperm.slane %v120, 0
    %v227 = vmul.f32 %v225, %v219
    %v228 = vadd.f32 %v223, %v227
    %v229 = vmul.f32 %v145, 1.8
    %v230 = vadd.f32 %v229, 0.2
    %v231 = vsub.f32 %v228, %v230
    %vm232 = vcmp.gt.f32.partialorder %v231, 0.0
    %v233 = vsel %vm232, 1, 0
    %v234 = vcvt.s32.f32 %v233
    %v235 = vmul.f32 %v234, %v230
    %v236 = vsub.f32 %v228, %v235
    %v238 = vperm.slane %v121, 0
    %v240 = vmul.f32 %v238, %v145
    %v242 = vperm.slane %v122, 0
    %v244 = vmul.f32 %v242, %v234
    %v245 = vadd.f32 %v240, %v244
    %v246 = vpack.c.bf16 %v234, %v234
    %v248 = vperm.slane %v139, 0
    %v266 = vunpack.c.l.b16 %v123
    %v267 = vunpack.c.l.b16 %v124
    %v268 = vunpack.c.l.b16 %v125
    %v269 = vunpack.c.l.b16 %v126
    %v270 = vunpack.c.l.b16 %v127
    %v271 = vunpack.c.l.b16 %v128
    %v272 = vunpack.c.l.b16 %v129
    %v273 = vunpack.c.l.b16 %v130
    %v274 = vunpack.c.l.b16 %v131
    %v275 = vunpack.c.l.b16 %v132
    %v276 = vunpack.c.l.b16 %v133
    %v277 = vunpack.c.l.b16 %v134
    %v278 = vunpack.c.l.b16 %v135
    %v279 = vunpack.c.l.b16 %v136
    %v280 = vunpack.c.l.b16 %v137
    %v281 = vunpack.c.l.b16 %v138
    %v282 = vpack.c.b16 %v267, %v266
    %v283 = vpack.c.b16 %v269, %v268
    %v284 = vpack.c.b16 %v271, %v270
    %v285 = vpack.c.b16 %v273, %v272
    %v286 = vpack.c.b16 %v275, %v274
    %v287 = vpack.c.b16 %v277, %v276
    %v288 = vpack.c.b16 %v279, %v278
    %v289 = vpack.c.b16 %v281, %v280
    %298 = vmatpush.bf16.msra.mxu0 %v289
    %299 = vmatpush.bf16.msra.mxu0 %v288
    %300 = vmatpush.bf16.msra.mxu0 %v287
    %301 = vmatpush.bf16.msra.mxu0 %v286
    %302 = vmatpush.bf16.msra.mxu0 %v285
    %303 = vmatpush.bf16.msra.mxu0 %v284
    %304 = vmatpush.bf16.msra.mxu0 %v283
    %305 = vmatpush.bf16.msra.mxu0 %v282
    %306 = vmatmul.bf16.gmra.mxu0 %v246
    %v307 = vpop.f32.mrf.mxu0
    %v308 = vadd.f32 %v248, %v307
    %v309 = vpop.f32.mrf.mxu0
    %310 = vdwg.mxu0
    %v312 = vperm.slane %v140, 0
    %v314 = vmul.f32 %v147, %v312
    %v316 = vperm.slane %v141, 0
    %v318 = vmul.f32 %v316, %v308
    %v319 = vadd.f32 %v314, %v318
    %v320 = vmul.f32 %v148, 1.8
    %v321 = vadd.f32 %v320, 0.2
    %v322 = vsub.f32 %v319, %v321
    %vm323 = vcmp.gt.f32.partialorder %v322, 0.0
    %v324 = vsel %vm323, 1, 0
    %v325 = vcvt.s32.f32 %v324
    %v326 = vmul.f32 %v325, %v321
    %v327 = vsub.f32 %v319, %v326
    %v329 = vperm.slane %v142, 0
    %v331 = vmul.f32 %v329, %v148
    %v333 = vperm.slane %v143, 0
    %v335 = vmul.f32 %v333, %v325
    %v336 = vadd.f32 %v331, %v335
    %337 = vst [vmem:[#allocation13] sm:$0xff] %v325
    %s338 = scalar_lea.vmem [#allocation7], 8
    %v339 = vld [vmem:[%s338] sm:$0xff]
    %340 = vmatpush.bf16.msra.mxu0 %v191
    %341 = vmatpush.bf16.msra.mxu0 %v190
    %342 = vmatpush.bf16.msra.mxu0 %v189
    %343 = vmatpush.bf16.msra.mxu0 %v188
    %344 = vmatpush.bf16.msra.mxu0 %v187
    %345 = vmatpush.bf16.msra.mxu0 %v186
    %346 = vmatpush.bf16.msra.mxu0 %v185
    %347 = vmatpush.bf16.msra.mxu0 %v184
    %348 = vmatmul.bf16.gmra.mxu0 %v246
    %v349 = vpop.f32.mrf.mxu0
    %v350 = vadd.f32 0.0, %v349
    %v351 = vpop.f32.mrf.mxu0
    %352 = vdwg.mxu0
    %v353 = vadd.f32 %v339, %v350
    %v355 = vperm.slane %v118, 0
    %v357 = vadd.f32 %v353, %v355
    %v358 = vmul.f32 %v236, %v221
    %v359 = vmul.f32 %v225, %v357
    %v360 = vadd.f32 %v358, %v359
    %v361 = vmul.f32 %v245, 1.8
    %v362 = vadd.f32 %v361, 0.2
    %v363 = vsub.f32 %v360, %v362
    %vm364 = vcmp.gt.f32.partialorder %v363, 0.0
    %v365 = vsel %vm364, 1, 0
    %v366 = vcvt.s32.f32 %v365
    %v367 = vmul.f32 %v366, %v362
    %v368 = vsub.f32 %v360, %v367
    %v369 = vmul.f32 %v238, %v245
    %v370 = vmul.f32 %v242, %v366
    %v371 = vadd.f32 %v369, %v370
    %v372 = vpack.c.bf16 %v366, %v366
    %373 = vmatpush.bf16.msra.mxu0 %v289
    %374 = vmatpush.bf16.msra.mxu0 %v288
    %375 = vmatpush.bf16.msra.mxu0 %v287
    %376 = vmatpush.bf16.msra.mxu0 %v286
    %377 = vmatpush.bf16.msra.mxu0 %v285
    %378 = vmatpush.bf16.msra.mxu0 %v284
    %379 = vmatpush.bf16.msra.mxu0 %v283
    %380 = vmatpush.bf16.msra.mxu0 %v282
    %381 = vmatmul.bf16.gmra.mxu0 %v372
    %v382 = vpop.f32.mrf.mxu0
    %v383 = vadd.f32 %v248, %v382
    %v384 = vpop.f32.mrf.mxu0
    %385 = vdwg.mxu0
    %v386 = vmul.f32 %v327, %v312
    %v387 = vmul.f32 %v316, %v383
    %v388 = vadd.f32 %v386, %v387
    %v389 = vmul.f32 %v336, 1.8
    %v390 = vadd.f32 %v389, 0.2
    %v391 = vsub.f32 %v388, %v390
    %vm392 = vcmp.gt.f32.partialorder %v391, 0.0
    %v393 = vsel %vm392, 1, 0
    %v394 = vcvt.s32.f32 %v393
    %v395 = vmul.f32 %v394, %v390
    %v396 = vsub.f32 %v388, %v395
    %v397 = vmul.f32 %v329, %v336
    %v398 = vmul.f32 %v333, %v394
    %v399 = vadd.f32 %v397, %v398
    %s400 = scalar_lea.vmem [#allocation13], 8
    %401 = vst [vmem:[%s400] sm:$0xff] %v394
    %s402 = scalar_lea.vmem [#allocation7], 16
    %v403 = vld [vmem:[%s402] sm:$0xff]
    %404 = vmatpush.bf16.msra.mxu0 %v191
    %405 = vmatpush.bf16.msra.mxu0 %v190
    %406 = vmatpush.bf16.msra.mxu0 %v189
    %407 = vmatpush.bf16.msra.mxu0 %v188
    %408 = vmatpush.bf16.msra.mxu0 %v187
    %409 = vmatpush.bf16.msra.mxu0 %v186
    %410 = vmatpush.bf16.msra.mxu0 %v185
    %411 = vmatpush.bf16.msra.mxu0 %v184
    %412 = vmatmul.bf16.gmra.mxu0 %v372
    %v413 = vpop.f32.mrf.mxu0
    %v414 = vadd.f32 0.0, %v413
    %v415 = vpop.f32.mrf.mxu0
    %416 = vdwg.mxu0
    %v417 = vadd.f32 %v403, %v414
    %v418 = vadd.f32 %v417, %v355
    %v419 = vmul.f32 %v368, %v221
    %v420 = vmul.f32 %v225, %v418
    %v421 = vadd.f32 %v419, %v420
    %v422 = vmul.f32 %v371, 1.8
    %v423 = vadd.f32 %v422, 0.2
    %v424 = vsub.f32 %v421, %v423
    %vm425 = vcmp.gt.f32.partialorder %v424, 0.0
    %v426 = vsel %vm425, 1, 0
    %v427 = vcvt.s32.f32 %v426
    %v428 = vmul.f32 %v427, %v423
    %v429 = vsub.f32 %v421, %v428
    %v430 = vmul.f32 %v238, %v371
    %v431 = vmul.f32 %v242, %v427
    %v432 = vadd.f32 %v430, %v431
    %v433 = vpack.c.bf16 %v427, %v427
    %434 = vmatpush.bf16.msra.mxu0 %v289
    %435 = vmatpush.bf16.msra.mxu0 %v288
    %436 = vmatpush.bf16.msra.mxu0 %v287
    %437 = vmatpush.bf16.msra.mxu0 %v286
    %438 = vmatpush.bf16.msra.mxu0 %v285
    %439 = vmatpush.bf16.msra.mxu0 %v284
    %440 = vmatpush.bf16.msra.mxu0 %v283
    %441 = vmatpush.bf16.msra.mxu0 %v282
    %442 = vmatmul.bf16.gmra.mxu0 %v433
    %v443 = vpop.f32.mrf.mxu0
    %v444 = vadd.f32 %v248, %v443
    %v445 = vpop.f32.mrf.mxu0
    %446 = vdwg.mxu0
    %v447 = vmul.f32 %v396, %v312
    %v448 = vmul.f32 %v316, %v444
    %v449 = vadd.f32 %v447, %v448
    %v450 = vmul.f32 %v399, 1.8
    %v451 = vadd.f32 %v450, 0.2
    %v452 = vsub.f32 %v449, %v451
    %vm453 = vcmp.gt.f32.partialorder %v452, 0.0
    %v454 = vsel %vm453, 1, 0
    %v455 = vcvt.s32.f32 %v454
    %v456 = vmul.f32 %v455, %v451
    %v457 = vsub.f32 %v449, %v456
    %v458 = vmul.f32 %v329, %v399
    %v459 = vmul.f32 %v333, %v455
    %v460 = vadd.f32 %v458, %v459
    %s461 = scalar_lea.vmem [#allocation13], 16
    %462 = vst [vmem:[%s461] sm:$0xff] %v455
    %s463 = scalar_lea.vmem [#allocation7], 24
    %v464 = vld [vmem:[%s463] sm:$0xff]
    %465 = vmatpush.bf16.msra.mxu0 %v191
    %466 = vmatpush.bf16.msra.mxu0 %v190
    %467 = vmatpush.bf16.msra.mxu0 %v189
    %468 = vmatpush.bf16.msra.mxu0 %v188
    %469 = vmatpush.bf16.msra.mxu0 %v187
    %470 = vmatpush.bf16.msra.mxu0 %v186
    %471 = vmatpush.bf16.msra.mxu0 %v185
    %472 = vmatpush.bf16.msra.mxu0 %v184
    %473 = vmatmul.bf16.gmra.mxu0 %v433
    %v474 = vpop.f32.mrf.mxu0
    %v475 = vadd.f32 0.0, %v474
    %v476 = vpop.f32.mrf.mxu0
    %477 = vdwg.mxu0
    %v478 = vadd.f32 %v464, %v475
    %v479 = vadd.f32 %v478, %v355
    %v480 = vmul.f32 %v429, %v221
    %v481 = vmul.f32 %v225, %v479
    %v482 = vadd.f32 %v480, %v481
    %v483 = vmul.f32 %v432, 1.8
    %v484 = vadd.f32 %v483, 0.2
    %v485 = vsub.f32 %v482, %v484
    %vm486 = vcmp.gt.f32.partialorder %v485, 0.0
    %v487 = vsel %vm486, 1, 0
    %v488 = vcvt.s32.f32 %v487
    %v489 = vmul.f32 %v488, %v484
    %v490 = vsub.f32 %v482, %v489
    %v491 = vmul.f32 %v238, %v432
    %v492 = vmul.f32 %v242, %v488
    %v493 = vadd.f32 %v491, %v492
    %v494 = vpack.c.bf16 %v488, %v488
    %495 = vmatpush.bf16.msra.mxu0 %v289
    %496 = vmatpush.bf16.msra.mxu0 %v288
    %497 = vmatpush.bf16.msra.mxu0 %v287
    %498 = vmatpush.bf16.msra.mxu0 %v286
    %499 = vmatpush.bf16.msra.mxu0 %v285
    %500 = vmatpush.bf16.msra.mxu0 %v284
    %501 = vmatpush.bf16.msra.mxu0 %v283
    %502 = vmatpush.bf16.msra.mxu0 %v282
    %503 = vmatmul.bf16.gmra.mxu0 %v494
    %v504 = vpop.f32.mrf.mxu0
    %v505 = vadd.f32 %v248, %v504
    %v506 = vpop.f32.mrf.mxu0
    %507 = vdwg.mxu0
    %v508 = vmul.f32 %v457, %v312
    %v509 = vmul.f32 %v316, %v505
    %v510 = vadd.f32 %v508, %v509
    %v511 = vmul.f32 %v460, 1.8
    %v512 = vadd.f32 %v511, 0.2
    %v513 = vsub.f32 %v510, %v512
    %vm514 = vcmp.gt.f32.partialorder %v513, 0.0
    %v515 = vsel %vm514, 1, 0
    %v516 = vcvt.s32.f32 %v515
    %v517 = vmul.f32 %v516, %v512
    %v518 = vsub.f32 %v510, %v517
    %v519 = vmul.f32 %v329, %v460
    %v520 = vmul.f32 %v333, %v516
    %v521 = vadd.f32 %v519, %v520
    %s522 = scalar_lea.vmem [#allocation13], 24
    %523 = vst [vmem:[%s522] sm:$0xff] %v516
    %s524 = scalar_lea.vmem [#allocation7], 32
    %v525 = vld [vmem:[%s524] sm:$0xff]
    %526 = vmatpush.bf16.msra.mxu0 %v191
    %527 = vmatpush.bf16.msra.mxu0 %v190
    %528 = vmatpush.bf16.msra.mxu0 %v189
    %529 = vmatpush.bf16.msra.mxu0 %v188
    %530 = vmatpush.bf16.msra.mxu0 %v187
    %531 = vmatpush.bf16.msra.mxu0 %v186
    %532 = vmatpush.bf16.msra.mxu0 %v185
    %533 = vmatpush.bf16.msra.mxu0 %v184
    %534 = vmatmul.bf16.gmra.mxu0 %v494
    %v535 = vpop.f32.mrf.mxu0
    %v536 = vadd.f32 0.0, %v535
    %v537 = vpop.f32.mrf.mxu0
    %538 = vdwg.mxu0
    %v539 = vadd.f32 %v525, %v536
    %v540 = vadd.f32 %v539, %v355
    %v541 = vmul.f32 %v490, %v221
    %v542 = vmul.f32 %v225, %v540
    %v543 = vadd.f32 %v541, %v542
    %v544 = vmul.f32 %v493, 1.8
    %v545 = vadd.f32 %v544, 0.2
    %v546 = vsub.f32 %v543, %v545
    %vm547 = vcmp.gt.f32.partialorder %v546, 0.0
    %v548 = vsel %vm547, 1, 0
    %v549 = vcvt.s32.f32 %v548
    %v550 = vmul.f32 %v549, %v545
    %v551 = vsub.f32 %v543, %v550
    %v552 = vmul.f32 %v238, %v493
    %v553 = vmul.f32 %v242, %v549
    %v554 = vadd.f32 %v552, %v553
    %v555 = vpack.c.bf16 %v549, %v549
    %556 = vmatpush.bf16.msra.mxu0 %v289
    %557 = vmatpush.bf16.msra.mxu0 %v288
    %558 = vmatpush.bf16.msra.mxu0 %v287
    %559 = vmatpush.bf16.msra.mxu0 %v286
    %560 = vmatpush.bf16.msra.mxu0 %v285
    %561 = vmatpush.bf16.msra.mxu0 %v284
    %562 = vmatpush.bf16.msra.mxu0 %v283
    %563 = vmatpush.bf16.msra.mxu0 %v282
    %564 = vmatmul.bf16.gmra.mxu0 %v555
    %v565 = vpop.f32.mrf.mxu0
    %v566 = vadd.f32 %v248, %v565
    %v567 = vpop.f32.mrf.mxu0
    %568 = vdwg.mxu0
    %v569 = vmul.f32 %v518, %v312
    %v570 = vmul.f32 %v316, %v566
    %v571 = vadd.f32 %v569, %v570
    %v572 = vmul.f32 %v521, 1.8
    %v573 = vadd.f32 %v572, 0.2
    %v574 = vsub.f32 %v571, %v573
    %vm575 = vcmp.gt.f32.partialorder %v574, 0.0
    %v576 = vsel %vm575, 1, 0
    %v577 = vcvt.s32.f32 %v576
    %v578 = vmul.f32 %v577, %v573
    %v579 = vsub.f32 %v571, %v578
    %v580 = vmul.f32 %v329, %v521
    %v581 = vmul.f32 %v333, %v577
    %v582 = vadd.f32 %v580, %v581
    %s583 = scalar_lea.vmem [#allocation13], 32
    %584 = vst [vmem:[%s583] sm:$0xff] %v577
    %s585 = scalar_lea.vmem [#allocation7], 40
    %v586 = vld [vmem:[%s585] sm:$0xff]
    %587 = vmatpush.bf16.msra.mxu0 %v191
    %588 = vmatpush.bf16.msra.mxu0 %v190
    %589 = vmatpush.bf16.msra.mxu0 %v189
    %590 = vmatpush.bf16.msra.mxu0 %v188
    %591 = vmatpush.bf16.msra.mxu0 %v187
    %592 = vmatpush.bf16.msra.mxu0 %v186
    %593 = vmatpush.bf16.msra.mxu0 %v185
    %594 = vmatpush.bf16.msra.mxu0 %v184
    %595 = vmatmul.bf16.gmra.mxu0 %v555
    %v596 = vpop.f32.mrf.mxu0
    %v597 = vadd.f32 0.0, %v596
    %v598 = vpop.f32.mrf.mxu0
    %599 = vdwg.mxu0
    %v600 = vadd.f32 %v586, %v597
    %v601 = vadd.f32 %v600, %v355
    %v602 = vmul.f32 %v551, %v221
    %v603 = vmul.f32 %v225, %v601
    %v604 = vadd.f32 %v602, %v603
    %v605 = vmul.f32 %v554, 1.8
    %v606 = vadd.f32 %v605, 0.2
    %v607 = vsub.f32 %v604, %v606
    %vm608 = vcmp.gt.f32.partialorder %v607, 0.0
    %v609 = vsel %vm608, 1, 0
    %v610 = vcvt.s32.f32 %v609
    %v611 = vmul.f32 %v610, %v606
    %v612 = vsub.f32 %v604, %v611
    %v613 = vmul.f32 %v238, %v554
    %v614 = vmul.f32 %v242, %v610
    %v615 = vadd.f32 %v613, %v614
    %v616 = vpack.c.bf16 %v610, %v610
    %617 = vmatpush.bf16.msra.mxu0 %v289
    %618 = vmatpush.bf16.msra.mxu0 %v288
    %619 = vmatpush.bf16.msra.mxu0 %v287
    %620 = vmatpush.bf16.msra.mxu0 %v286
    %621 = vmatpush.bf16.msra.mxu0 %v285
    %622 = vmatpush.bf16.msra.mxu0 %v284
    %623 = vmatpush.bf16.msra.mxu0 %v283
    %624 = vmatpush.bf16.msra.mxu0 %v282
    %625 = vmatmul.bf16.gmra.mxu0 %v616
    %v626 = vpop.f32.mrf.mxu0
    %v627 = vadd.f32 %v248, %v626
    %v628 = vpop.f32.mrf.mxu0
    %629 = vdwg.mxu0
    %v630 = vmul.f32 %v579, %v312
    %v631 = vmul.f32 %v316, %v627
    %v632 = vadd.f32 %v630, %v631
    %v633 = vmul.f32 %v582, 1.8
    %v634 = vadd.f32 %v633, 0.2
    %v635 = vsub.f32 %v632, %v634
    %vm636 = vcmp.gt.f32.partialorder %v635, 0.0
    %v637 = vsel %vm636, 1, 0
    %v638 = vcvt.s32.f32 %v637
    %v639 = vmul.f32 %v638, %v634
    %v640 = vsub.f32 %v632, %v639
    %v641 = vmul.f32 %v329, %v582
    %v642 = vmul.f32 %v333, %v638
    %v643 = vadd.f32 %v641, %v642
    %s644 = scalar_lea.vmem [#allocation13], 40
    %645 = vst [vmem:[%s644] sm:$0xff] %v638
    %s646 = scalar_lea.vmem [#allocation7], 48
    %v647 = vld [vmem:[%s646] sm:$0xff]
    %648 = vmatpush.bf16.msra.mxu0 %v191
    %649 = vmatpush.bf16.msra.mxu0 %v190
    %650 = vmatpush.bf16.msra.mxu0 %v189
    %651 = vmatpush.bf16.msra.mxu0 %v188
    %652 = vmatpush.bf16.msra.mxu0 %v187
    %653 = vmatpush.bf16.msra.mxu0 %v186
    %654 = vmatpush.bf16.msra.mxu0 %v185
    %655 = vmatpush.bf16.msra.mxu0 %v184
    %656 = vmatmul.bf16.gmra.mxu0 %v616
    %v657 = vpop.f32.mrf.mxu0
    %v658 = vadd.f32 0.0, %v657
    %v659 = vpop.f32.mrf.mxu0
    %660 = vdwg.mxu0
    %v661 = vadd.f32 %v647, %v658
    %v662 = vadd.f32 %v661, %v355
    %v663 = vmul.f32 %v612, %v221
    %v664 = vmul.f32 %v225, %v662
    %v665 = vadd.f32 %v663, %v664
    %v666 = vmul.f32 %v615, 1.8
    %v667 = vadd.f32 %v666, 0.2
    %v668 = vsub.f32 %v665, %v667
    %vm669 = vcmp.gt.f32.partialorder %v668, 0.0
    %v670 = vsel %vm669, 1, 0
    %v671 = vcvt.s32.f32 %v670
    %v672 = vmul.f32 %v671, %v667
    %v673 = vsub.f32 %v665, %v672
    %v674 = vmul.f32 %v238, %v615
    %v675 = vmul.f32 %v242, %v671
    %v676 = vadd.f32 %v674, %v675
    %v677 = vpack.c.bf16 %v671, %v671
    %678 = vmatpush.bf16.msra.mxu0 %v289
    %679 = vmatpush.bf16.msra.mxu0 %v288
    %680 = vmatpush.bf16.msra.mxu0 %v287
    %681 = vmatpush.bf16.msra.mxu0 %v286
    %682 = vmatpush.bf16.msra.mxu0 %v285
    %683 = vmatpush.bf16.msra.mxu0 %v284
    %684 = vmatpush.bf16.msra.mxu0 %v283
    %685 = vmatpush.bf16.msra.mxu0 %v282
    %686 = vmatmul.bf16.gmra.mxu0 %v677
    %v687 = vpop.f32.mrf.mxu0
    %v688 = vadd.f32 %v248, %v687
    %v689 = vpop.f32.mrf.mxu0
    %690 = vdwg.mxu0
    %v691 = vmul.f32 %v640, %v312
    %v692 = vmul.f32 %v316, %v688
    %v693 = vadd.f32 %v691, %v692
    %v694 = vmul.f32 %v643, 1.8
    %v695 = vadd.f32 %v694, 0.2
    %v696 = vsub.f32 %v693, %v695
    %vm697 = vcmp.gt.f32.partialorder %v696, 0.0
    %v698 = vsel %vm697, 1, 0
    %v699 = vcvt.s32.f32 %v698
    %v700 = vmul.f32 %v699, %v695
    %v701 = vsub.f32 %v693, %v700
    %v702 = vmul.f32 %v329, %v643
    %v703 = vmul.f32 %v333, %v699
    %v704 = vadd.f32 %v702, %v703
    %s705 = scalar_lea.vmem [#allocation13], 48
    %706 = vst [vmem:[%s705] sm:$0xff] %v699
    %s707 = scalar_lea.vmem [#allocation7], 56
    %v708 = vld [vmem:[%s707] sm:$0xff]
    %709 = vmatpush.bf16.msra.mxu0 %v191
    %710 = vmatpush.bf16.msra.mxu0 %v190
    %711 = vmatpush.bf16.msra.mxu0 %v189
    %712 = vmatpush.bf16.msra.mxu0 %v188
    %713 = vmatpush.bf16.msra.mxu0 %v187
    %714 = vmatpush.bf16.msra.mxu0 %v186
    %715 = vmatpush.bf16.msra.mxu0 %v185
    %716 = vmatpush.bf16.msra.mxu0 %v184
    %717 = vmatmul.bf16.gmra.mxu0 %v677
    %v718 = vpop.f32.mrf.mxu0
    %v719 = vadd.f32 0.0, %v718
    %v720 = vpop.f32.mrf.mxu0
    %721 = vdwg.mxu0
    %v722 = vadd.f32 %v708, %v719
    %v723 = vadd.f32 %v722, %v355
    %v724 = vmul.f32 %v673, %v221
    %v725 = vmul.f32 %v225, %v723
    %v726 = vadd.f32 %v724, %v725
    %v727 = vmul.f32 %v676, 1.8
    %v728 = vadd.f32 %v727, 0.2
    %v729 = vsub.f32 %v726, %v728
    %vm730 = vcmp.gt.f32.partialorder %v729, 0.0
    %v731 = vsel %vm730, 1, 0
    %v732 = vcvt.s32.f32 %v731
    %v733 = vmul.f32 %v732, %v728
    %v734 = vsub.f32 %v726, %v733
    %v735 = vmul.f32 %v238, %v676
    %v736 = vmul.f32 %v242, %v732
    %v737 = vadd.f32 %v735, %v736
    %v738 = vpack.c.bf16 %v732, %v732
    %739 = vmatpush.bf16.msra.mxu0 %v289
    %740 = vmatpush.bf16.msra.mxu0 %v288
    %741 = vmatpush.bf16.msra.mxu0 %v287
    %742 = vmatpush.bf16.msra.mxu0 %v286
    %743 = vmatpush.bf16.msra.mxu0 %v285
    %744 = vmatpush.bf16.msra.mxu0 %v284
    %745 = vmatpush.bf16.msra.mxu0 %v283
    %746 = vmatpush.bf16.msra.mxu0 %v282
    %747 = vmatmul.bf16.gmra.mxu0 %v738
    %v748 = vpop.f32.mrf.mxu0
    %v749 = vadd.f32 %v248, %v748
    %v750 = vpop.f32.mrf.mxu0
    %751 = vdwg.mxu0
    %v752 = vmul.f32 %v701, %v312
    %v753 = vmul.f32 %v316, %v749
    %v754 = vadd.f32 %v752, %v753
    %v755 = vmul.f32 %v704, 1.8
    %v756 = vadd.f32 %v755, 0.2
    %v757 = vsub.f32 %v754, %v756
    %vm758 = vcmp.gt.f32.partialorder %v757, 0.0
    %v759 = vsel %vm758, 1, 0
    %v760 = vcvt.s32.f32 %v759
    %v761 = vmul.f32 %v760, %v756
    %v762 = vsub.f32 %v754, %v761
    %v763 = vmul.f32 %v329, %v704
    %v764 = vmul.f32 %v333, %v760
    %v765 = vadd.f32 %v763, %v764
    %s766 = scalar_lea.vmem [#allocation13], 56
    %767 = vst [vmem:[%s766] sm:$0xff] %v760
    %768 = vst [vmem:[#allocation2] sm:$0xff] %v734
    %769 = vst [vmem:[#allocation3] sm:$0xff] %v737
    %770 = vst [vmem:[#allocation4] sm:$0xf] %v738
    %771 = vst [vmem:[#allocation5] sm:$0xff] %v762
    %772 = vst [vmem:[#allocation6] sm:$0xff] %v765
    // Predicated region
    $region70: #{tpu_custom_call.1} parent=1 // pred_check
      _
    $region71: #{tpu_custom_call.1} parent=1 // pred_check_branch
      %774 = sbr.rel (0) target = $region73
    $region72: #{tpu_custom_call.1} parent=1 // pred_region
      %776 = vsyncadd [#allocation9], 0
      %s777 = sshll.u32 [#allocation13], 4
      %s778 = int_to_ptr.vmem [resolvable:$true] %s777
      %s779 = sshll.u32 %s13, 4
      %s780 = int_to_ptr.hbm [resolvable:$true] %s779
      %785 = dma.vmem_to_hbm [thread:$0]  %s778, 1024, %s780, [#allocation9], 128, 128, 8
    $region73: #{tpu_custom_call.1} parent=1 // pred_fallthru
      _
    // Predicated region
    $region74: #{tpu_custom_call.1} parent=1 // pred_check
      _
    $region75: #{tpu_custom_call.1} parent=1 // pred_check_branch
      %787 = sbr.rel (0) target = $region77
    $region76: #{tpu_custom_call.1} parent=1 // pred_region
      %789 = dma.done [#allocation9], 1024
    $region77: #{tpu_custom_call.1} parent=1 // pred_fallthru
      _
    %790 = vsyncpa [#allocation8], 1
    %791 = vsyncpa [#allocation11], 1
    %792 = vsyncpa [#allocation9], 1

</llo_original>
